<compile_context>
chip_gen: v6e
topology: v6e:2x2x1
jax: 0.10.0
libtpu: 0.0.40
codegen_flags: <defaults>
</compile_context>

<pallas_src>
import jax
import jax.numpy as jnp
from jax.experimental import pallas as pl
from jax.experimental.pallas import tpu as pltpu


def _cdiv(a, b):
    return -(-a // b)


def _round_up(a, m):
    return _cdiv(a, m) * m


def _prompt_add_kernel(x_ref, prompt_ref, o_ref):
    # x_ref/o_ref:  (b_blk, C, s_blk) lane-dense tile of the prompt-slab rows
    # prompt_ref:   (1,     C, s_blk) zero-padded prompt (constant batch index
    #                                 -> fetched once per slab tile, resident)
    o_ref[...] = x_ref[...] + prompt_ref[...]


def _pick_tiles(batch, channels, slab, itemsize, *, target_bytes=2 << 20, min_steps=4):
    """Pick (batch_block, slab_block) giving ~2 MiB lane-dense tiles.

    Keeps total grid length >= min_steps (when the batch allows) so v7x's two
    TensorCores each get >= 2 steps of prefetch/compute/writeback overlap,
    while the double-buffered footprint stays well under v5e's 16 MiB default
    scoped VMEM.
    """
    # Slab-axis tile: a multiple of 128 that divides the slab exactly, so no
    # ragged slab blocks ever mix prompt padding into in-bounds output rows.
    slab_bytes = channels * slab * itemsize
    if slab_bytes <= target_bytes or slab % 128 != 0:
        s_blk = slab
    else:
        budget = max(128, (target_bytes // (channels * itemsize)) // 128 * 128)
        s_blk = 128
        for cand in range(budget, 127, -128):
            if slab % cand == 0:
                s_blk = cand
                break
    ns = _cdiv(slab, s_blk)

    tile_bytes = channels * s_blk * itemsize
    b_blk = max(1, min(batch, target_bytes // max(1, tile_bytes)))
    steps_wanted = min(min_steps, batch * ns)
    if ns < steps_wanted:
        b_blk = min(b_blk, max(1, batch // _cdiv(steps_wanted, ns)))
    return b_blk, s_blk


def make_prompt_slab(patch, feature_h, feature_w, dtype):
    """Zero-padded prompt covering only the leading rows of the feature map.

    Returns [1, C, S] with S = min(H*W, round_up(psize*W, 128)) — the only
    region the kernel touches.  Depends only on the learnable patch, so build
    it once per parameter update, not per forward call.
    """
    c, ph, pw = patch.shape
    assert ph <= feature_h and pw <= feature_w
    hw = feature_h * feature_w
    slab = min(hw, _round_up(ph * feature_w, 128))
    rows = _cdiv(slab, feature_w)
    canvas = jnp.zeros((1, c, rows, feature_w), dtype=dtype)
    canvas = canvas.at[0, :, :ph, :pw].set(patch.astype(dtype))
    return canvas.reshape(1, c, rows * feature_w)[:, :, :slab]


def prompt_add(x, prompt_slab):
    """out = x + zero-padded prompt; x's HBM buffer is reused via aliasing.

    x:           [B, C, H, W]  (donate it — e.g. jax.jit(..., donate_argnums=0)
                                — so the untouched rows are never copied)
    prompt_slab: [1, C, S]     from make_prompt_slab()
    """
    B, C, H, W = x.shape
    HW = H * W
    one, pc, S = prompt_slab.shape
    assert one == 1 and pc == C and S <= HW
    assert prompt_slab.dtype == x.dtype
    assert C % 8 == 0, "lane-dense (C, H*W) blocks need C % 8 == 0 (f32)"
    itemsize = jnp.dtype(x.dtype).itemsize

    x_flat = x.reshape(B, C, HW)
    b_blk, s_blk = _pick_tiles(B, C, S, itemsize)
    grid = (_cdiv(B, b_blk), _cdiv(S, s_blk))

    cost = pl.CostEstimate(
        flops=B * C * S,
        transcendentals=0,
        bytes_accessed=(2 * B + 1) * C * S * itemsize,
    )

    out_flat = pl.pallas_call(
        _prompt_add_kernel,
        out_shape=jax.ShapeDtypeStruct((B, C, HW), x.dtype),
        grid_spec=pltpu.PrefetchScalarGridSpec(
            num_scalar_prefetch=0,
            grid=grid,
            in_specs=[
                pl.BlockSpec((b_blk, C, s_blk), lambda b, s: (b, 0, s)),
                pl.BlockSpec((1, C, s_blk), lambda b, s: (0, 0, s)),
            ],
            out_specs=pl.BlockSpec((b_blk, C, s_blk), lambda b, s: (b, 0, s)),
        ),
        compiler_params=pltpu.CompilerParams(
            dimension_semantics=("parallel", "parallel"),
        ),
        cost_estimate=cost,
        # Output 0 reuses x's HBM buffer: blocks past the prompt slab are
        # never written, so rows >= psize keep their original values without
        # ever being streamed through VMEM.
        input_output_aliases={0: 0},
    )(x_flat, prompt_slab)

    return out_flat.reshape(B, C, H, W)


def fixed_patch_prompter_feature_1(x, patch):
    """Drop-in equivalent of the PyTorch forward (builds the slab per call).

    Prefer make_prompt_slab() once per parameter update + prompt_add() per
    forward (with x donated) for the bandwidth win.
    """
    return prompt_add(x, make_prompt_slab(patch, x.shape[2], x.shape[3], x.dtype))


if __name__ == "__main__":
    # The parameter shape fixes channels at 64 and prompt_size at 24, so the
    # smallest consistent feature map is >= 24x24; use B=8 with 32x32 features.
    B, C, H, W = 8, 64, 32, 32
    psize = 24
    std = 1.0

    key = jax.random.PRNGKey(0)
    kx, kp = jax.random.split(key)
    x = jax.random.normal(kx, (B, C, H, W), dtype=jnp.float32)
    # Deterministic analogue of torch.randn([64, psize, psize]) * std.
    patch = jax.random.normal(kp, (C, psize, psize), dtype=jnp.float32) * std

    # Pure-JAX reference (same semantics as the PyTorch forward).  Computed
    # and materialized BEFORE the kernel call because x is donated below.
    ref = x + jnp.zeros_like(x).at[:, :, :psize, :psize].set(patch[None])
    ref = jax.block_until_ready(ref)

    # Prompt slab depends only on the learnable patch -> built once, outside
    # the per-forward path.  x is donated so the aliased output reuses its
    # HBM buffer and the untouched 3/4 of the feature map is never streamed.
    prompt_slab = jax.block_until_ready(make_prompt_slab(patch, H, W, x.dtype))
    forward = jax.jit(prompt_add, donate_argnums=(0,))
    out = jax.block_until_ready(forward(x, prompt_slab))

    assert out.shape == ref.shape and out.dtype == ref.dtype
    assert jnp.allclose(out, ref, atol=1e-6, rtol=1e-6)
    print("KERNEL_OK")
</pallas_src>

<mosaic_0001>
module attributes {stable_mosaic.version = 11 : i64} {
  func.func @_prompt_add_kernel(%arg0: i32, %arg1: i32, %arg2: memref<2x64x768xf32, #tpu.memory_space<vmem>>, %arg3: memref<1x64x768xf32, #tpu.memory_space<vmem>>, %arg4: memref<2x64x768xf32, #tpu.memory_space<vmem>>) attributes {dimension_semantics = [#tpu.dimension_semantics<parallel>, #tpu.dimension_semantics<parallel>], iteration_bounds = array<i64: 4, 1>, scalar_prefetch = 0 : i64, scratch_operands = 0 : i64, tpu.core_type = #tpu.core_type<tc>, window_params = [{transform_indices = @transform_0, window_bounds = array<i64: 2, 64, 768>}, {transform_indices = @transform_1, window_bounds = array<i64: 1, 64, 768>}, {transform_indices = @transform_2, window_bounds = array<i64: 2, 64, 768>}]} {
    %c0 = arith.constant 0 : index
    %c0_0 = arith.constant 0 : index
    %c0_1 = arith.constant 0 : index
    %0 = vector.load %arg2[%c0, %c0_0, %c0_1] : memref<2x64x768xf32, #tpu.memory_space<vmem>>, vector<2x64x768xf32>
    %c0_2 = arith.constant 0 : index
    %c0_3 = arith.constant 0 : index
    %c0_4 = arith.constant 0 : index
    %1 = vector.load %arg3[%c0_2, %c0_3, %c0_4] : memref<1x64x768xf32, #tpu.memory_space<vmem>>, vector<1x64x768xf32>
    %2 = vector.broadcast %1 : vector<1x64x768xf32> to vector<2x64x768xf32>
    %3 = arith.addf %0, %2 : vector<2x64x768xf32>
    %c0_5 = arith.constant 0 : index
    %c0_6 = arith.constant 0 : index
    %c0_7 = arith.constant 0 : index
    %4 = vector.load %arg4[%c0_5, %c0_6, %c0_7] : memref<2x64x768xf32, #tpu.memory_space<vmem>>, vector<2x64x768xf32>
    tpu.vector_store %arg4[%c0_5, %c0_6, %c0_7], %3 {strides = array<i32>} : memref<2x64x768xf32, #tpu.memory_space<vmem>>, vector<2x64x768xf32>,
    return
  }
  func.func @transform_0(%arg0: i32, %arg1: i32) -> (i32, i32, i32) {
    %c0_i32 = arith.constant 0 : i32
    %c0_i32_0 = arith.constant 0 : i32
    return %arg0, %c0_i32, %arg1 : i32, i32, i32
  }
  func.func @transform_1(%arg0: i32, %arg1: i32) -> (i32, i32, i32) {
    %c0_i32 = arith.constant 0 : i32
    %c0_i32_0 = arith.constant 0 : i32
    %c0_i32_1 = arith.constant 0 : i32
    return %c0_i32, %c0_i32_0, %arg1 : i32, i32, i32
  }
  func.func @transform_2(%arg0: i32, %arg1: i32) -> (i32, i32, i32) {
    %c0_i32 = arith.constant 0 : i32
    %c0_i32_0 = arith.constant 0 : i32
    return %arg0, %c0_i32, %arg1 : i32, i32, i32
  }
}

</mosaic_0001>

<llo_original>
// kernel: prompt_add.1
$region0: #{prompt_add.1}
  #allocation0 [shape = 'u32[]', space=smem, size = 0x4, offset = 0x4, fixed_abs, tag = 'smem constant byte address 0x4 - core index']
  #allocation1 [shape = 'u32[144,128]{1,0:T(1,128)}', space=vmem, size = 0x12000, scoped, tag = 'internal scratch']
  %s0 = inlined_call_operand.vmem [shape: f32[8,64,1024], index: 0, kind: input, shape index: {}, may-alias: {0,2}]
  %s1 = inlined_call_operand.vmem [shape: f32[1,64,768], index: 1, kind: input, shape index: {}]
  %s2 = inlined_call_operand.vmem [shape: f32[8,64,1024], index: 2, kind: output, shape index: {}, may-alias: {0,2}]
  %s3 = sld [smem:[#allocation0]]
  $region169: #{prompt_add.1} parent=0
    _
  %s5 = ssub.s32 1, %s3
  %s6 = scalar_select 0, %s5, %s3
  $region1: #{prompt_add.1} parent=0
    #allocation2 [shape = 'u8[786432]{0}', space=vmem, size = 0xc0000, scoped, tag = 'input window, operand 0']
    #allocation3 [shape = 'u8[786432]{0}', space=vmem, size = 0xc0000, scoped, tag = 'output window, operand 0']
    loop: start=0, step=1, limit=6
    $region2: #{prompt_add.1} parent=1 // loop_pre_header
      _
    $region3: #{prompt_add.1} parent=1 // loop_header
      %s8 = sphi 0, %s12
      %p9 = scmp.ge.s32.totalorder %s8, 6
      %s15 = sphi 0, %s27
      %s16 = sphi 0, %s23
      %s17 = sphi 0, %s15
      %s18 = sphi 0, %s16
      %s19 = sphi 0, %s17
      %s20 = sphi 0, %s18
      %s32 = sphi 0, %s34
      %s35 = sphi 0, %s32
      %s36 = sphi 0, %s35
      %s52 = sphi 0, %s36
      %s58 = sphi 0, %s60
      %s61 = sphi 0, %s58
      %s62 = sphi 0, %s61
      %s78 = sphi 0, %s62
      %s86 = sphi 0, %s88
      %s89 = sphi 0, %s86
      %s90 = sphi 0, %s89
      %s106 = sphi 0, %s90
    $region4: #{prompt_add.1} parent=1 // loop_header_branch
      %11 = sbr.rel (%p9) target = $region8
    $region5: #{prompt_add.1} parent=1 // loop_body
      %s13 = ssub.s32 %s8, 1
      %s14 = ssub.s32 %s8, 2
      %s21 = sadd.s32 1, %s16
      %p22 = scmp.ge.s32.totalorder %s21, 1
      %s23 = scalar_select %p22, 0, %s21
      %s24 = sadd.s32 1, %s15
      %s25 = scalar_select %p22, %s24, %s15
      %p26 = scmp.ge.s32.totalorder %s25, 4
      %s27 = scalar_select %p26, 0, %s25
      %s28 = ssub.s32 %s15, %s27
      %s29 = ssub.s32 %s16, %s23
      %s30 = sor.u32 %s28, %s29
      %p31 = scmp.eq.s32.totalorder %s30, 0
      %s33 = sadd.s32 %s32, 1
      %s34 = scalar_select %p31, %s32, %s33
      %p37 = pneg %p31
      %p38 = scmp.eq.s32.totalorder %s8, 3
      %p39 = por %p37, %p38
      %p40 = scmp.ne.s32.totalorder %s32, %s35
      %p41 = scmp.eq.s32.totalorder %s8, 0
      %p42 = por %p40, %p41
      %p43 = scmp.ne.s32.totalorder %s32, %s35
      %p44 = scmp.eq.s32.totalorder %s13, 3
      %p45 = por %p43, %p44
      %p46 = scmp.ne.s32.totalorder %s35, %s36
      %p47 = scmp.eq.s32.totalorder %s13, 0
      %p48 = por %p46, %p47
      %p49 = scmp.ne.s32.totalorder %s35, %s36
      %p50 = scmp.eq.s32.totalorder %s14, 3
      %p51 = por %p49, %p50
      %p53 = scmp.ne.s32.totalorder %s36, %s52
      %p54 = scmp.eq.s32.totalorder %s14, 0
      %p55 = por %p53, %p54
      %s56 = ssub.s32 %s16, %s23
      %p57 = scmp.eq.s32.totalorder %s56, 0
      %s59 = sadd.s32 %s58, 1
      %s60 = scalar_select %p57, %s58, %s59
      %p63 = pneg %p57
      %p64 = scmp.eq.s32.totalorder %s8, 3
      %p65 = por %p63, %p64
      %p66 = scmp.ne.s32.totalorder %s58, %s61
      %p67 = scmp.eq.s32.totalorder %s8, 0
      %p68 = por %p66, %p67
      %p69 = scmp.ne.s32.totalorder %s58, %s61
      %p70 = scmp.eq.s32.totalorder %s13, 3
      %p71 = por %p69, %p70
      %p72 = scmp.ne.s32.totalorder %s61, %s62
      %p73 = scmp.eq.s32.totalorder %s13, 0
      %p74 = por %p72, %p73
      %p75 = scmp.ne.s32.totalorder %s61, %s62
      %p76 = scmp.eq.s32.totalorder %s14, 3
      %p77 = por %p75, %p76
      %p79 = scmp.ne.s32.totalorder %s62, %s78
      %p80 = scmp.eq.s32.totalorder %s14, 0
      %p81 = por %p79, %p80
      %s82 = ssub.s32 %s15, %s27
      %s83 = ssub.s32 %s16, %s23
      %s84 = sor.u32 %s82, %s83
      %p85 = scmp.eq.s32.totalorder %s84, 0
      %s87 = sadd.s32 %s86, 1
      %s88 = scalar_select %p85, %s86, %s87
      %p91 = pneg %p85
      %p92 = scmp.eq.s32.totalorder %s8, 3
      %p93 = por %p91, %p92
      %p94 = scmp.ne.s32.totalorder %s86, %s89
      %p95 = scmp.eq.s32.totalorder %s8, 0
      %p96 = por %p94, %p95
      %p97 = scmp.ne.s32.totalorder %s86, %s89
      %p98 = scmp.eq.s32.totalorder %s13, 3
      %p99 = por %p97, %p98
      %p100 = scmp.ne.s32.totalorder %s89, %s90
      %p101 = scmp.eq.s32.totalorder %s13, 0
      %p102 = por %p100, %p101
      %p103 = scmp.ne.s32.totalorder %s89, %s90
      %p104 = scmp.eq.s32.totalorder %s14, 3
      %p105 = por %p103, %p104
      %p107 = scmp.ne.s32.totalorder %s90, %s106
      %p108 = scmp.eq.s32.totalorder %s14, 0
      %p109 = por %p107, %p108
      %p110 = scmp.le.s32.totalorder 1, %s8
      %p111 = scmp.lt.s32.totalorder %s8, 5
      %p112 = pnand %p110, %p111
      %p113 = pneg %p112
      // Predicated region
      $region9: #{prompt_add.1} parent=5 // pred_check
        _
      $region10: #{prompt_add.1} parent=5 // pred_check_branch
        %115 = sbr.rel (%p112) target = $region12
      $region11: #{prompt_add.1} parent=5 // pred_region
        %s116 = ssub.s32 %s8, 1
        // Predicated region
        $region13: #{prompt_add.1} parent=11 // pred_check
          %p117 = pneg %p74
        $region14: #{prompt_add.1} parent=11 // pred_check_branch
          %119 = sbr.rel (%p117) target = $region16
        $region15: #{prompt_add.1} parent=11 // pred_region
          %s120 = smul.u32 6, %s18
          %p121 = scmp.lt.s32.totalorder %s120, 5
          %s122 = scalar_select %p121, %s120, 5
          %s123 = smul.addr %s122, 8
          %s124 = scalar_lea.vmem %s1, %s123
          %s125 = smul.u32 6, %s18
        $region16: #{prompt_add.1} parent=11 // pred_fallthru
          _
      $region12: #{prompt_add.1} parent=5 // pred_fallthru
        _
      %p126 = scmp.lt.s32.totalorder %s8, 4
      // Predicated region
      $region17: #{prompt_add.1} parent=5 // pred_check
        %p127 = pneg %p126
      $region18: #{prompt_add.1} parent=5 // pred_check_branch
        %129 = sbr.rel (%p127) target = $region20
      $region19: #{prompt_add.1} parent=5 // pred_region
        // Predicated region
        $region21: #{prompt_add.1} parent=19 // pred_check
          %p130 = pneg %p42
        $region22: #{prompt_add.1} parent=19 // pred_check_branch
          %132 = sbr.rel (%p130) target = $region24
        $region23: #{prompt_add.1} parent=19 // pred_region
          %s133 = sand.u32 %s32, 1
          %s134 = sand.u32 %s32, 1
          %s135 = smul.addr %s134, 768
          %s136 = scalar_lea.vmem [#allocation2], %s135
          %s137 = smul.u32 2, %s15
          %s138 = smul.u32 6, %s16
          %s139 = ssub.s32 8, %s138
          %p140 = scmp.lt.s32.totalorder %s139, 6
          %s141 = scalar_select %p140, %s139, 6
          %s142 = smul.u32 2048, %s141
          %p143 = scmp.ne.s32.totalorder 0, %s142
          %s144 = smul.addr %s137, 64
          %s145 = sadd.s32 %s138, %s144
          %s146 = smul.addr %s145, 8
          %s147 = scalar_lea.vmem %s0, %s146
          %s148 = smul.u32 %s141, 8
          // Predicated region
          $region25: #{prompt_add.1} parent=23 // pred_check
            %p149 = pneg %p143
          $region26: #{prompt_add.1} parent=23 // pred_check_branch
            %151 = sbr.rel (%p149) target = $region28
          $region27: #{prompt_add.1} parent=23 // pred_region
            %p152 = scmp.lt.u32.totalorder %s148, 8
            %p153 = pneg %p152
            // Predicated region
            $region29: #{prompt_add.1} parent=27 // pred_check
              _
            $region30: #{prompt_add.1} parent=27 // pred_check_branch
              %155 = sbr.rel (%p152) target = $region32
            $region31: #{prompt_add.1} parent=27 // pred_region
              %s201 = sand.u32 %s148, 7
              %p202 = scmp.eq.s32.totalorder %s201, 0
              // Predicated region
              $region44: #{prompt_add.1} parent=31 // pred_check
                %p203 = pneg %p202
              $region45: #{prompt_add.1} parent=31 // pred_check_branch
                %205 = sbr.rel (%p203) target = $region47
              $region46: #{prompt_add.1} parent=31 // pred_region
                %s206 = sshrl.u32 %s148, 3
                %s207 = sshrl.u32 %s206, 2
                // While loop
                $region48: #{prompt_add.1} parent=46 // loop_pre_header
                  _
                $region49: #{prompt_add.1} parent=46 // loop_header
                  %s211 = sphi 0, %s213
                  %p212 = scmp.ge.s32.totalorder %s211, %s207
                  %s216 = sphi 0, %s349
                  %s217 = sphi %s147, %s352
                  %s218 = sphi %s136, %s353
                $region50: #{prompt_add.1} parent=46 // loop_header_branch
                  %215 = sbr.rel (%p212) target = $region54
                $region51: #{prompt_add.1} parent=46 // loop_body
                  %v219 = vld [vmem:[%s217] sm:$0xff]
                  %220 = vst [vmem:[%s218] sm:$0xff] %v219
                  %v221 = vld [vmem:[%s217 + $0x8] sm:$0xff]
                  %222 = vst [vmem:[%s218 + $0x8] sm:$0xff] %v221
                  %v223 = vld [vmem:[%s217 + $0x10] sm:$0xff]
                  %224 = vst [vmem:[%s218 + $0x10] sm:$0xff] %v223
                  %v225 = vld [vmem:[%s217 + $0x18] sm:$0xff]
                  %226 = vst [vmem:[%s218 + $0x18] sm:$0xff] %v225
                  %v227 = vld [vmem:[%s217 + $0x40] sm:$0xff]
                  %228 = vst [vmem:[%s218 + $0x30] sm:$0xff] %v227
                  %v229 = vld [vmem:[%s217 + $0x48] sm:$0xff]
                  %230 = vst [vmem:[%s218 + $0x38] sm:$0xff] %v229
                  %v231 = vld [vmem:[%s217 + $0x50] sm:$0xff]
                  %232 = vst [vmem:[%s218 + $0x40] sm:$0xff] %v231
                  %v233 = vld [vmem:[%s217 + $0x58] sm:$0xff]
                  %234 = vst [vmem:[%s218 + $0x48] sm:$0xff] %v233
                  %v235 = vld [vmem:[%s217 + $0x80] sm:$0xff]
                  %236 = vst [vmem:[%s218 + $0x60] sm:$0xff] %v235
                  %v237 = vld [vmem:[%s217 + $0x88] sm:$0xff]
                  %238 = vst [vmem:[%s218 + $0x68] sm:$0xff] %v237
                  %v239 = vld [vmem:[%s217 + $0x90] sm:$0xff]
                  %240 = vst [vmem:[%s218 + $0x70] sm:$0xff] %v239
                  %v241 = vld [vmem:[%s217 + $0x98] sm:$0xff]
                  %242 = vst [vmem:[%s218 + $0x78] sm:$0xff] %v241
                  %v243 = vld [vmem:[%s217 + $0xc0] sm:$0xff]
                  %244 = vst [vmem:[%s218 + $0x90] sm:$0xff] %v243
                  %v245 = vld [vmem:[%s217 + $0xc8] sm:$0xff]
                  %246 = vst [vmem:[%s218 + $0x98] sm:$0xff] %v245
                  %v247 = vld [vmem:[%s217 + $0xd0] sm:$0xff]
                  %248 = vst [vmem:[%s218 + $0xa0] sm:$0xff] %v247
                  %v249 = vld [vmem:[%s217 + $0xd8] sm:$0xff]
                  %250 = vst [vmem:[%s218 + $0xa8] sm:$0xff] %v249
                  %v251 = vld [vmem:[%s217 + $0x100] sm:$0xff]
                  %252 = vst [vmem:[%s218 + $0xc0] sm:$0xff] %v251
                  %v253 = vld [vmem:[%s217 + $0x108] sm:$0xff]
                  %254 = vst [vmem:[%s218 + $0xc8] sm:$0xff] %v253
                  %v255 = vld [vmem:[%s217 + $0x110] sm:$0xff]
                  %256 = vst [vmem:[%s218 + $0xd0] sm:$0xff] %v255
                  %v257 = vld [vmem:[%s217 + $0x118] sm:$0xff]
                  %258 = vst [vmem:[%s218 + $0xd8] sm:$0xff] %v257
                  %v259 = vld [vmem:[%s217 + $0x140] sm:$0xff]
                  %260 = vst [vmem:[%s218 + $0xf0] sm:$0xff] %v259
                  %v261 = vld [vmem:[%s217 + $0x148] sm:$0xff]
                  %262 = vst [vmem:[%s218 + $0xf8] sm:$0xff] %v261
                  %v263 = vld [vmem:[%s217 + $0x150] sm:$0xff]
                  %264 = vst [vmem:[%s218 + $0x100] sm:$0xff] %v263
                  %v265 = vld [vmem:[%s217 + $0x158] sm:$0xff]
                  %266 = vst [vmem:[%s218 + $0x108] sm:$0xff] %v265
                  %v267 = vld [vmem:[%s217 + $0x180] sm:$0xff]
                  %268 = vst [vmem:[%s218 + $0x120] sm:$0xff] %v267
                  %v269 = vld [vmem:[%s217 + $0x188] sm:$0xff]
                  %270 = vst [vmem:[%s218 + $0x128] sm:$0xff] %v269
                  %v271 = vld [vmem:[%s217 + $0x190] sm:$0xff]
                  %272 = vst [vmem:[%s218 + $0x130] sm:$0xff] %v271
                  %v273 = vld [vmem:[%s217 + $0x198] sm:$0xff]
                  %274 = vst [vmem:[%s218 + $0x138] sm:$0xff] %v273
                  %v275 = vld [vmem:[%s217 + $0x1c0] sm:$0xff]
                  %276 = vst [vmem:[%s218 + $0x150] sm:$0xff] %v275
                  %v277 = vld [vmem:[%s217 + $0x1c8] sm:$0xff]
                  %278 = vst [vmem:[%s218 + $0x158] sm:$0xff] %v277
                  %v279 = vld [vmem:[%s217 + $0x1d0] sm:$0xff]
                  %280 = vst [vmem:[%s218 + $0x160] sm:$0xff] %v279
                  %v281 = vld [vmem:[%s217 + $0x1d8] sm:$0xff]
                  %282 = vst [vmem:[%s218 + $0x168] sm:$0xff] %v281
                  %v283 = vld [vmem:[%s217 + $0x200] sm:$0xff]
                  %284 = vst [vmem:[%s218 + $0x180] sm:$0xff] %v283
                  %v285 = vld [vmem:[%s217 + $0x208] sm:$0xff]
                  %286 = vst [vmem:[%s218 + $0x188] sm:$0xff] %v285
                  %v287 = vld [vmem:[%s217 + $0x210] sm:$0xff]
                  %288 = vst [vmem:[%s218 + $0x190] sm:$0xff] %v287
                  %v289 = vld [vmem:[%s217 + $0x218] sm:$0xff]
                  %290 = vst [vmem:[%s218 + $0x198] sm:$0xff] %v289
                  %v291 = vld [vmem:[%s217 + $0x240] sm:$0xff]
                  %292 = vst [vmem:[%s218 + $0x1b0] sm:$0xff] %v291
                  %v293 = vld [vmem:[%s217 + $0x248] sm:$0xff]
                  %294 = vst [vmem:[%s218 + $0x1b8] sm:$0xff] %v293
                  %v295 = vld [vmem:[%s217 + $0x250] sm:$0xff]
                  %296 = vst [vmem:[%s218 + $0x1c0] sm:$0xff] %v295
                  %v297 = vld [vmem:[%s217 + $0x258] sm:$0xff]
                  %298 = vst [vmem:[%s218 + $0x1c8] sm:$0xff] %v297
                  %v299 = vld [vmem:[%s217 + $0x280] sm:$0xff]
                  %300 = vst [vmem:[%s218 + $0x1e0] sm:$0xff] %v299
                  %v301 = vld [vmem:[%s217 + $0x288] sm:$0xff]
                  %302 = vst [vmem:[%s218 + $0x1e8] sm:$0xff] %v301
                  %v303 = vld [vmem:[%s217 + $0x290] sm:$0xff]
                  %304 = vst [vmem:[%s218 + $0x1f0] sm:$0xff] %v303
                  %v305 = vld [vmem:[%s217 + $0x298] sm:$0xff]
                  %306 = vst [vmem:[%s218 + $0x1f8] sm:$0xff] %v305
                  %v307 = vld [vmem:[%s217 + $0x2c0] sm:$0xff]
                  %308 = vst [vmem:[%s218 + $0x210] sm:$0xff] %v307
                  %v309 = vld [vmem:[%s217 + $0x2c8] sm:$0xff]
                  %310 = vst [vmem:[%s218 + $0x218] sm:$0xff] %v309
                  %v311 = vld [vmem:[%s217 + $0x2d0] sm:$0xff]
                  %312 = vst [vmem:[%s218 + $0x220] sm:$0xff] %v311
                  %v313 = vld [vmem:[%s217 + $0x2d8] sm:$0xff]
                  %314 = vst [vmem:[%s218 + $0x228] sm:$0xff] %v313
                  %v315 = vld [vmem:[%s217 + $0x300] sm:$0xff]
                  %316 = vst [vmem:[%s218 + $0x240] sm:$0xff] %v315
                  %v317 = vld [vmem:[%s217 + $0x308] sm:$0xff]
                  %318 = vst [vmem:[%s218 + $0x248] sm:$0xff] %v317
                  %v319 = vld [vmem:[%s217 + $0x310] sm:$0xff]
                  %320 = vst [vmem:[%s218 + $0x250] sm:$0xff] %v319
                  %v321 = vld [vmem:[%s217 + $0x318] sm:$0xff]
                  %322 = vst [vmem:[%s218 + $0x258] sm:$0xff] %v321
                  %v323 = vld [vmem:[%s217 + $0x340] sm:$0xff]
                  %324 = vst [vmem:[%s218 + $0x270] sm:$0xff] %v323
                  %v325 = vld [vmem:[%s217 + $0x348] sm:$0xff]
                  %326 = vst [vmem:[%s218 + $0x278] sm:$0xff] %v325
                  %v327 = vld [vmem:[%s217 + $0x350] sm:$0xff]
                  %328 = vst [vmem:[%s218 + $0x280] sm:$0xff] %v327
                  %v329 = vld [vmem:[%s217 + $0x358] sm:$0xff]
                  %330 = vst [vmem:[%s218 + $0x288] sm:$0xff] %v329
                  %v331 = vld [vmem:[%s217 + $0x380] sm:$0xff]
                  %332 = vst [vmem:[%s218 + $0x2a0] sm:$0xff] %v331
                  %v333 = vld [vmem:[%s217 + $0x388] sm:$0xff]
                  %334 = vst [vmem:[%s218 + $0x2a8] sm:$0xff] %v333
                  %v335 = vld [vmem:[%s217 + $0x390] sm:$0xff]
                  %336 = vst [vmem:[%s218 + $0x2b0] sm:$0xff] %v335
                  %v337 = vld [vmem:[%s217 + $0x398] sm:$0xff]
                  %338 = vst [vmem:[%s218 + $0x2b8] sm:$0xff] %v337
                  %v339 = vld [vmem:[%s217 + $0x3c0] sm:$0xff]
                  %340 = vst [vmem:[%s218 + $0x2d0] sm:$0xff] %v339
                  %v341 = vld [vmem:[%s217 + $0x3c8] sm:$0xff]
                  %342 = vst [vmem:[%s218 + $0x2d8] sm:$0xff] %v341
                  %v343 = vld [vmem:[%s217 + $0x3d0] sm:$0xff]
                  %344 = vst [vmem:[%s218 + $0x2e0] sm:$0xff] %v343
                  %v345 = vld [vmem:[%s217 + $0x3d8] sm:$0xff]
                  %346 = vst [vmem:[%s218 + $0x2e8] sm:$0xff] %v345
                  %s347 = sadd.s32 1, %s216
                  %p348 = scmp.ge.s32.totalorder %s347, %s207
                  %s349 = scalar_select %p348, 0, %s347
                  %s350 = smul.u32 %s349, 32
                  %s351 = smul.u32 %s349, 32
                  %s352 = scalar_lea.vmem %s147, %s350
                  %s353 = scalar_lea.vmem %s136, %s351 [#allocation2]
                $region52: #{prompt_add.1} parent=46 // loop_footer
                  %s213 = sadd.s32 %s211, 1
                $region53: #{prompt_add.1} parent=46 // loop_footer_branch
                  %210 = sbr.rel target = $region49
                $region54: #{prompt_add.1} parent=46 // loop_exit
                  _
                %s354 = sshrl.u32 %s206, 2
                %s355 = sand.u32 %s206, 3
                %s356 = smul.u32 %s354, 4
                %s357 = smul.u32 128, %s356
                %s358 = sshra.s32 %s357, 4
                %s359 = scalar_lea.vmem %s147, %s358
                %s360 = smul.u32 128, %s356
                %s361 = sshra.s32 %s360, 4
                %s362 = scalar_lea.vmem %s136, %s361 [#allocation2]
                // While loop
                $region55: #{prompt_add.1} parent=46 // loop_pre_header
                  _
                $region56: #{prompt_add.1} parent=46 // loop_header
                  %s366 = sphi 0, %s368
                  %p367 = scmp.ge.s32.totalorder %s366, %s355
                  %s371 = sphi 0, %s408
                  %s372 = sphi %s359, %s411
                  %s373 = sphi %s362, %s412
                $region57: #{prompt_add.1} parent=46 // loop_header_branch
                  %370 = sbr.rel (%p367) target = $region61
                $region58: #{prompt_add.1} parent=46 // loop_body
                  %v374 = vld [vmem:[%s372] sm:$0xff]
                  %375 = vst [vmem:[%s373] sm:$0xff] %v374
                  %v376 = vld [vmem:[%s372 + $0x40] sm:$0xff]
                  %377 = vst [vmem:[%s373 + $0x30] sm:$0xff] %v376
                  %v378 = vld [vmem:[%s372 + $0x80] sm:$0xff]
                  %379 = vst [vmem:[%s373 + $0x60] sm:$0xff] %v378
                  %v380 = vld [vmem:[%s372 + $0xc0] sm:$0xff]
                  %381 = vst [vmem:[%s373 + $0x90] sm:$0xff] %v380
                  %v382 = vld [vmem:[%s372 + $0x100] sm:$0xff]
                  %383 = vst [vmem:[%s373 + $0xc0] sm:$0xff] %v382
                  %v384 = vld [vmem:[%s372 + $0x140] sm:$0xff]
                  %385 = vst [vmem:[%s373 + $0xf0] sm:$0xff] %v384
                  %v386 = vld [vmem:[%s372 + $0x180] sm:$0xff]
                  %387 = vst [vmem:[%s373 + $0x120] sm:$0xff] %v386
                  %v388 = vld [vmem:[%s372 + $0x1c0] sm:$0xff]
                  %389 = vst [vmem:[%s373 + $0x150] sm:$0xff] %v388
                  %v390 = vld [vmem:[%s372 + $0x200] sm:$0xff]
                  %391 = vst [vmem:[%s373 + $0x180] sm:$0xff] %v390
                  %v392 = vld [vmem:[%s372 + $0x240] sm:$0xff]
                  %393 = vst [vmem:[%s373 + $0x1b0] sm:$0xff] %v392
                  %v394 = vld [vmem:[%s372 + $0x280] sm:$0xff]
                  %395 = vst [vmem:[%s373 + $0x1e0] sm:$0xff] %v394
                  %v396 = vld [vmem:[%s372 + $0x2c0] sm:$0xff]
                  %397 = vst [vmem:[%s373 + $0x210] sm:$0xff] %v396
                  %v398 = vld [vmem:[%s372 + $0x300] sm:$0xff]
                  %399 = vst [vmem:[%s373 + $0x240] sm:$0xff] %v398
                  %v400 = vld [vmem:[%s372 + $0x340] sm:$0xff]
                  %401 = vst [vmem:[%s373 + $0x270] sm:$0xff] %v400
                  %v402 = vld [vmem:[%s372 + $0x380] sm:$0xff]
                  %403 = vst [vmem:[%s373 + $0x2a0] sm:$0xff] %v402
                  %v404 = vld [vmem:[%s372 + $0x3c0] sm:$0xff]
                  %405 = vst [vmem:[%s373 + $0x2d0] sm:$0xff] %v404
                  %s406 = sadd.s32 1, %s371
                  %p407 = scmp.ge.s32.totalorder %s406, %s355
                  %s408 = scalar_select %p407, 0, %s406
                  %s409 = smul.u32 %s408, 8
                  %s410 = smul.u32 %s408, 8
                  %s411 = scalar_lea.vmem %s359, %s409
                  %s412 = scalar_lea.vmem %s362, %s410 [#allocation2]
                $region59: #{prompt_add.1} parent=46 // loop_footer
                  %s368 = sadd.s32 %s366, 1
                $region60: #{prompt_add.1} parent=46 // loop_footer_branch
                  %365 = sbr.rel target = $region56
                $region61: #{prompt_add.1} parent=46 // loop_exit
                  _
              $region47: #{prompt_add.1} parent=31 // pred_fallthru
                _
              %p413 = pneg %p202
              // Predicated region
              $region62: #{prompt_add.1} parent=31 // pred_check
                _
              $region63: #{prompt_add.1} parent=31 // pred_check_branch
                %415 = sbr.rel (%p202) target = $region65
              $region64: #{prompt_add.1} parent=31 // pred_region
                %s416 = sand.u32 %s148, 7
                %s417 = ssub.s32 %s148, %s416
                %s418 = scalar_lea.vmem %s147, %s417
                %s419 = ssub.s32 %s148, %s416
                %s420 = scalar_lea.vmem %s136, %s419 [#allocation2]
                %s421 = sshrl.u32 %s148, 3
                %s422 = sshrl.u32 %s421, 2
                // While loop
                $region66: #{prompt_add.1} parent=64 // loop_pre_header
                  _
                $region67: #{prompt_add.1} parent=64 // loop_header
                  %s426 = sphi 0, %s428
                  %p427 = scmp.ge.s32.totalorder %s426, %s422
                  %s431 = sphi 0, %s564
                  %s432 = sphi %s147, %s567
                  %s433 = sphi %s136, %s568
                $region68: #{prompt_add.1} parent=64 // loop_header_branch
                  %430 = sbr.rel (%p427) target = $region72
                $region69: #{prompt_add.1} parent=64 // loop_body
                  %v434 = vld [vmem:[%s432] sm:$0xff]
                  %435 = vst [vmem:[%s433] sm:$0xff] %v434
                  %v436 = vld [vmem:[%s432 + $0x8] sm:$0xff]
                  %437 = vst [vmem:[%s433 + $0x8] sm:$0xff] %v436
                  %v438 = vld [vmem:[%s432 + $0x10] sm:$0xff]
                  %439 = vst [vmem:[%s433 + $0x10] sm:$0xff] %v438
                  %v440 = vld [vmem:[%s432 + $0x18] sm:$0xff]
                  %441 = vst [vmem:[%s433 + $0x18] sm:$0xff] %v440
                  %v442 = vld [vmem:[%s432 + $0x40] sm:$0xff]
                  %443 = vst [vmem:[%s433 + $0x30] sm:$0xff] %v442
                  %v444 = vld [vmem:[%s432 + $0x48] sm:$0xff]
                  %445 = vst [vmem:[%s433 + $0x38] sm:$0xff] %v444
                  %v446 = vld [vmem:[%s432 + $0x50] sm:$0xff]
                  %447 = vst [vmem:[%s433 + $0x40] sm:$0xff] %v446
                  %v448 = vld [vmem:[%s432 + $0x58] sm:$0xff]
                  %449 = vst [vmem:[%s433 + $0x48] sm:$0xff] %v448
                  %v450 = vld [vmem:[%s432 + $0x80] sm:$0xff]
                  %451 = vst [vmem:[%s433 + $0x60] sm:$0xff] %v450
                  %v452 = vld [vmem:[%s432 + $0x88] sm:$0xff]
                  %453 = vst [vmem:[%s433 + $0x68] sm:$0xff] %v452
                  %v454 = vld [vmem:[%s432 + $0x90] sm:$0xff]
                  %455 = vst [vmem:[%s433 + $0x70] sm:$0xff] %v454
                  %v456 = vld [vmem:[%s432 + $0x98] sm:$0xff]
                  %457 = vst [vmem:[%s433 + $0x78] sm:$0xff] %v456
                  %v458 = vld [vmem:[%s432 + $0xc0] sm:$0xff]
                  %459 = vst [vmem:[%s433 + $0x90] sm:$0xff] %v458
                  %v460 = vld [vmem:[%s432 + $0xc8] sm:$0xff]
                  %461 = vst [vmem:[%s433 + $0x98] sm:$0xff] %v460
                  %v462 = vld [vmem:[%s432 + $0xd0] sm:$0xff]
                  %463 = vst [vmem:[%s433 + $0xa0] sm:$0xff] %v462
                  %v464 = vld [vmem:[%s432 + $0xd8] sm:$0xff]
                  %465 = vst [vmem:[%s433 + $0xa8] sm:$0xff] %v464
                  %v466 = vld [vmem:[%s432 + $0x100] sm:$0xff]
                  %467 = vst [vmem:[%s433 + $0xc0] sm:$0xff] %v466
                  %v468 = vld [vmem:[%s432 + $0x108] sm:$0xff]
                  %469 = vst [vmem:[%s433 + $0xc8] sm:$0xff] %v468
                  %v470 = vld [vmem:[%s432 + $0x110] sm:$0xff]
                  %471 = vst [vmem:[%s433 + $0xd0] sm:$0xff] %v470
                  %v472 = vld [vmem:[%s432 + $0x118] sm:$0xff]
                  %473 = vst [vmem:[%s433 + $0xd8] sm:$0xff] %v472
                  %v474 = vld [vmem:[%s432 + $0x140] sm:$0xff]
                  %475 = vst [vmem:[%s433 + $0xf0] sm:$0xff] %v474
                  %v476 = vld [vmem:[%s432 + $0x148] sm:$0xff]
                  %477 = vst [vmem:[%s433 + $0xf8] sm:$0xff] %v476
                  %v478 = vld [vmem:[%s432 + $0x150] sm:$0xff]
                  %479 = vst [vmem:[%s433 + $0x100] sm:$0xff] %v478
                  %v480 = vld [vmem:[%s432 + $0x158] sm:$0xff]
                  %481 = vst [vmem:[%s433 + $0x108] sm:$0xff] %v480
                  %v482 = vld [vmem:[%s432 + $0x180] sm:$0xff]
                  %483 = vst [vmem:[%s433 + $0x120] sm:$0xff] %v482
                  %v484 = vld [vmem:[%s432 + $0x188] sm:$0xff]
                  %485 = vst [vmem:[%s433 + $0x128] sm:$0xff] %v484
                  %v486 = vld [vmem:[%s432 + $0x190] sm:$0xff]
                  %487 = vst [vmem:[%s433 + $0x130] sm:$0xff] %v486
                  %v488 = vld [vmem:[%s432 + $0x198] sm:$0xff]
                  %489 = vst [vmem:[%s433 + $0x138] sm:$0xff] %v488
                  %v490 = vld [vmem:[%s432 + $0x1c0] sm:$0xff]
                  %491 = vst [vmem:[%s433 + $0x150] sm:$0xff] %v490
                  %v492 = vld [vmem:[%s432 + $0x1c8] sm:$0xff]
                  %493 = vst [vmem:[%s433 + $0x158] sm:$0xff] %v492
                  %v494 = vld [vmem:[%s432 + $0x1d0] sm:$0xff]
                  %495 = vst [vmem:[%s433 + $0x160] sm:$0xff] %v494
                  %v496 = vld [vmem:[%s432 + $0x1d8] sm:$0xff]
                  %497 = vst [vmem:[%s433 + $0x168] sm:$0xff] %v496
                  %v498 = vld [vmem:[%s432 + $0x200] sm:$0xff]
                  %499 = vst [vmem:[%s433 + $0x180] sm:$0xff] %v498
                  %v500 = vld [vmem:[%s432 + $0x208] sm:$0xff]
                  %501 = vst [vmem:[%s433 + $0x188] sm:$0xff] %v500
                  %v502 = vld [vmem:[%s432 + $0x210] sm:$0xff]
                  %503 = vst [vmem:[%s433 + $0x190] sm:$0xff] %v502
                  %v504 = vld [vmem:[%s432 + $0x218] sm:$0xff]
                  %505 = vst [vmem:[%s433 + $0x198] sm:$0xff] %v504
                  %v506 = vld [vmem:[%s432 + $0x240] sm:$0xff]
                  %507 = vst [vmem:[%s433 + $0x1b0] sm:$0xff] %v506
                  %v508 = vld [vmem:[%s432 + $0x248] sm:$0xff]
                  %509 = vst [vmem:[%s433 + $0x1b8] sm:$0xff] %v508
                  %v510 = vld [vmem:[%s432 + $0x250] sm:$0xff]
                  %511 = vst [vmem:[%s433 + $0x1c0] sm:$0xff] %v510
                  %v512 = vld [vmem:[%s432 + $0x258] sm:$0xff]
                  %513 = vst [vmem:[%s433 + $0x1c8] sm:$0xff] %v512
                  %v514 = vld [vmem:[%s432 + $0x280] sm:$0xff]
                  %515 = vst [vmem:[%s433 + $0x1e0] sm:$0xff] %v514
                  %v516 = vld [vmem:[%s432 + $0x288] sm:$0xff]
                  %517 = vst [vmem:[%s433 + $0x1e8] sm:$0xff] %v516
                  %v518 = vld [vmem:[%s432 + $0x290] sm:$0xff]
                  %519 = vst [vmem:[%s433 + $0x1f0] sm:$0xff] %v518
                  %v520 = vld [vmem:[%s432 + $0x298] sm:$0xff]
                  %521 = vst [vmem:[%s433 + $0x1f8] sm:$0xff] %v520
                  %v522 = vld [vmem:[%s432 + $0x2c0] sm:$0xff]
                  %523 = vst [vmem:[%s433 + $0x210] sm:$0xff] %v522
                  %v524 = vld [vmem:[%s432 + $0x2c8] sm:$0xff]
                  %525 = vst [vmem:[%s433 + $0x218] sm:$0xff] %v524
                  %v526 = vld [vmem:[%s432 + $0x2d0] sm:$0xff]
                  %527 = vst [vmem:[%s433 + $0x220] sm:$0xff] %v526
                  %v528 = vld [vmem:[%s432 + $0x2d8] sm:$0xff]
                  %529 = vst [vmem:[%s433 + $0x228] sm:$0xff] %v528
                  %v530 = vld [vmem:[%s432 + $0x300] sm:$0xff]
                  %531 = vst [vmem:[%s433 + $0x240] sm:$0xff] %v530
                  %v532 = vld [vmem:[%s432 + $0x308] sm:$0xff]
                  %533 = vst [vmem:[%s433 + $0x248] sm:$0xff] %v532
                  %v534 = vld [vmem:[%s432 + $0x310] sm:$0xff]
                  %535 = vst [vmem:[%s433 + $0x250] sm:$0xff] %v534
                  %v536 = vld [vmem:[%s432 + $0x318] sm:$0xff]
                  %537 = vst [vmem:[%s433 + $0x258] sm:$0xff] %v536
                  %v538 = vld [vmem:[%s432 + $0x340] sm:$0xff]
                  %539 = vst [vmem:[%s433 + $0x270] sm:$0xff] %v538
                  %v540 = vld [vmem:[%s432 + $0x348] sm:$0xff]
                  %541 = vst [vmem:[%s433 + $0x278] sm:$0xff] %v540
                  %v542 = vld [vmem:[%s432 + $0x350] sm:$0xff]
                  %543 = vst [vmem:[%s433 + $0x280] sm:$0xff] %v542
                  %v544 = vld [vmem:[%s432 + $0x358] sm:$0xff]
                  %545 = vst [vmem:[%s433 + $0x288] sm:$0xff] %v544
                  %v546 = vld [vmem:[%s432 + $0x380] sm:$0xff]
                  %547 = vst [vmem:[%s433 + $0x2a0] sm:$0xff] %v546
                  %v548 = vld [vmem:[%s432 + $0x388] sm:$0xff]
                  %549 = vst [vmem:[%s433 + $0x2a8] sm:$0xff] %v548
                  %v550 = vld [vmem:[%s432 + $0x390] sm:$0xff]
                  %551 = vst [vmem:[%s433 + $0x2b0] sm:$0xff] %v550
                  %v552 = vld [vmem:[%s432 + $0x398] sm:$0xff]
                  %553 = vst [vmem:[%s433 + $0x2b8] sm:$0xff] %v552
                  %v554 = vld [vmem:[%s432 + $0x3c0] sm:$0xff]
                  %555 = vst [vmem:[%s433 + $0x2d0] sm:$0xff] %v554
                  %v556 = vld [vmem:[%s432 + $0x3c8] sm:$0xff]
                  %557 = vst [vmem:[%s433 + $0x2d8] sm:$0xff] %v556
                  %v558 = vld [vmem:[%s432 + $0x3d0] sm:$0xff]
                  %559 = vst [vmem:[%s433 + $0x2e0] sm:$0xff] %v558
                  %v560 = vld [vmem:[%s432 + $0x3d8] sm:$0xff]
                  %561 = vst [vmem:[%s433 + $0x2e8] sm:$0xff] %v560
                  %s562 = sadd.s32 1, %s431
                  %p563 = scmp.ge.s32.totalorder %s562, %s422
                  %s564 = scalar_select %p563, 0, %s562
                  %s565 = smul.u32 %s564, 32
                  %s566 = smul.u32 %s564, 32
                  %s567 = scalar_lea.vmem %s147, %s565
                  %s568 = scalar_lea.vmem %s136, %s566 [#allocation2]
                $region70: #{prompt_add.1} parent=64 // loop_footer
                  %s428 = sadd.s32 %s426, 1
                $region71: #{prompt_add.1} parent=64 // loop_footer_branch
                  %425 = sbr.rel target = $region67
                $region72: #{prompt_add.1} parent=64 // loop_exit
                  _
                %s569 = sshrl.u32 %s421, 2
                %s570 = sand.u32 %s421, 3
                %s571 = smul.u32 %s569, 4
                %s572 = smul.u32 128, %s571
                %s573 = sshra.s32 %s572, 4
                %s574 = scalar_lea.vmem %s147, %s573
                %s575 = smul.u32 128, %s571
                %s576 = sshra.s32 %s575, 4
                %s577 = scalar_lea.vmem %s136, %s576 [#allocation2]
                // While loop
                $region73: #{prompt_add.1} parent=64 // loop_pre_header
                  _
                $region74: #{prompt_add.1} parent=64 // loop_header
                  %s581 = sphi 0, %s583
                  %p582 = scmp.ge.s32.totalorder %s581, %s570
                  %s586 = sphi 0, %s623
                  %s587 = sphi %s574, %s626
                  %s588 = sphi %s577, %s627
                $region75: #{prompt_add.1} parent=64 // loop_header_branch
                  %585 = sbr.rel (%p582) target = $region79
                $region76: #{prompt_add.1} parent=64 // loop_body
                  %v589 = vld [vmem:[%s587] sm:$0xff]
                  %590 = vst [vmem:[%s588] sm:$0xff] %v589
                  %v591 = vld [vmem:[%s587 + $0x40] sm:$0xff]
                  %592 = vst [vmem:[%s588 + $0x30] sm:$0xff] %v591
                  %v593 = vld [vmem:[%s587 + $0x80] sm:$0xff]
                  %594 = vst [vmem:[%s588 + $0x60] sm:$0xff] %v593
                  %v595 = vld [vmem:[%s587 + $0xc0] sm:$0xff]
                  %596 = vst [vmem:[%s588 + $0x90] sm:$0xff] %v595
                  %v597 = vld [vmem:[%s587 + $0x100] sm:$0xff]
                  %598 = vst [vmem:[%s588 + $0xc0] sm:$0xff] %v597
                  %v599 = vld [vmem:[%s587 + $0x140] sm:$0xff]
                  %600 = vst [vmem:[%s588 + $0xf0] sm:$0xff] %v599
                  %v601 = vld [vmem:[%s587 + $0x180] sm:$0xff]
                  %602 = vst [vmem:[%s588 + $0x120] sm:$0xff] %v601
                  %v603 = vld [vmem:[%s587 + $0x1c0] sm:$0xff]
                  %604 = vst [vmem:[%s588 + $0x150] sm:$0xff] %v603
                  %v605 = vld [vmem:[%s587 + $0x200] sm:$0xff]
                  %606 = vst [vmem:[%s588 + $0x180] sm:$0xff] %v605
                  %v607 = vld [vmem:[%s587 + $0x240] sm:$0xff]
                  %608 = vst [vmem:[%s588 + $0x1b0] sm:$0xff] %v607
                  %v609 = vld [vmem:[%s587 + $0x280] sm:$0xff]
                  %610 = vst [vmem:[%s588 + $0x1e0] sm:$0xff] %v609
                  %v611 = vld [vmem:[%s587 + $0x2c0] sm:$0xff]
                  %612 = vst [vmem:[%s588 + $0x210] sm:$0xff] %v611
                  %v613 = vld [vmem:[%s587 + $0x300] sm:$0xff]
                  %614 = vst [vmem:[%s588 + $0x240] sm:$0xff] %v613
                  %v615 = vld [vmem:[%s587 + $0x340] sm:$0xff]
                  %616 = vst [vmem:[%s588 + $0x270] sm:$0xff] %v615
                  %v617 = vld [vmem:[%s587 + $0x380] sm:$0xff]
                  %618 = vst [vmem:[%s588 + $0x2a0] sm:$0xff] %v617
                  %v619 = vld [vmem:[%s587 + $0x3c0] sm:$0xff]
                  %620 = vst [vmem:[%s588 + $0x2d0] sm:$0xff] %v619
                  %s621 = sadd.s32 1, %s586
                  %p622 = scmp.ge.s32.totalorder %s621, %s570
                  %s623 = scalar_select %p622, 0, %s621
                  %s624 = smul.u32 %s623, 8
                  %s625 = smul.u32 %s623, 8
                  %s626 = scalar_lea.vmem %s574, %s624
                  %s627 = scalar_lea.vmem %s577, %s625 [#allocation2]
                $region77: #{prompt_add.1} parent=64 // loop_footer
                  %s583 = sadd.s32 %s581, 1
                $region78: #{prompt_add.1} parent=64 // loop_footer_branch
                  %580 = sbr.rel target = $region74
                $region79: #{prompt_add.1} parent=64 // loop_exit
                  _
                %s628 = sshll.u32 1, %s416
                %s629 = ssub.s32 %s628, 1
                loop: start=0, step=1, limit=1
                $region80: #{prompt_add.1} parent=64 // loop_pre_header
                  _
                $region81: #{prompt_add.1} parent=64 // loop_header
                  %s631 = sphi 0, %s635
                  %p632 = scmp.ge.s32.totalorder %s631, 1
                  %s636 = sphi %s418, %s418
                  %s637 = sphi %s420, %s420
                $region82: #{prompt_add.1} parent=64 // loop_header_branch
                  %634 = sbr.rel (%p632) target = $region86
                $region83: #{prompt_add.1} parent=64 // loop_body
                  %v638 = vld [vmem:[%s636] sm:%s629]
                  %639 = vst [vmem:[%s637] sm:%s629] %v638
                  %v640 = vld [vmem:[%s636 + $0x40] sm:%s629]
                  %641 = vst [vmem:[%s637 + $0x30] sm:%s629] %v640
                  %v642 = vld [vmem:[%s636 + $0x80] sm:%s629]
                  %643 = vst [vmem:[%s637 + $0x60] sm:%s629] %v642
                  %v644 = vld [vmem:[%s636 + $0xc0] sm:%s629]
                  %645 = vst [vmem:[%s637 + $0x90] sm:%s629] %v644
                  %v646 = vld [vmem:[%s636 + $0x100] sm:%s629]
                  %647 = vst [vmem:[%s637 + $0xc0] sm:%s629] %v646
                  %v648 = vld [vmem:[%s636 + $0x140] sm:%s629]
                  %649 = vst [vmem:[%s637 + $0xf0] sm:%s629] %v648
                  %v650 = vld [vmem:[%s636 + $0x180] sm:%s629]
                  %651 = vst [vmem:[%s637 + $0x120] sm:%s629] %v650
                  %v652 = vld [vmem:[%s636 + $0x1c0] sm:%s629]
                  %653 = vst [vmem:[%s637 + $0x150] sm:%s629] %v652
                  %v654 = vld [vmem:[%s636 + $0x200] sm:%s629]
                  %655 = vst [vmem:[%s637 + $0x180] sm:%s629] %v654
                  %v656 = vld [vmem:[%s636 + $0x240] sm:%s629]
                  %657 = vst [vmem:[%s637 + $0x1b0] sm:%s629] %v656
                  %v658 = vld [vmem:[%s636 + $0x280] sm:%s629]
                  %659 = vst [vmem:[%s637 + $0x1e0] sm:%s629] %v658
                  %v660 = vld [vmem:[%s636 + $0x2c0] sm:%s629]
                  %661 = vst [vmem:[%s637 + $0x210] sm:%s629] %v660
                  %v662 = vld [vmem:[%s636 + $0x300] sm:%s629]
                  %663 = vst [vmem:[%s637 + $0x240] sm:%s629] %v662
                  %v664 = vld [vmem:[%s636 + $0x340] sm:%s629]
                  %665 = vst [vmem:[%s637 + $0x270] sm:%s629] %v664
                  %v666 = vld [vmem:[%s636 + $0x380] sm:%s629]
                  %667 = vst [vmem:[%s637 + $0x2a0] sm:%s629] %v666
                  %v668 = vld [vmem:[%s636 + $0x3c0] sm:%s629]
                  %669 = vst [vmem:[%s637 + $0x2d0] sm:%s629] %v668
                $region84: #{prompt_add.1} parent=64 // loop_footer
                  %s635 = sadd.s32 1, %s631
                $region85: #{prompt_add.1} parent=64 // loop_footer_branch
                  %630 = sbr.rel target = $region81
                $region86: #{prompt_add.1} parent=64 // loop_exit
                  _
              $region65: #{prompt_add.1} parent=31 // pred_fallthru
                _
            $region32: #{prompt_add.1} parent=27 // pred_fallthru
              _
            // Predicated region
            $region33: #{prompt_add.1} parent=27 // pred_check
              %p156 = pneg %p152
            $region34: #{prompt_add.1} parent=27 // pred_check_branch
              %158 = sbr.rel (%p156) target = $region36
            $region35: #{prompt_add.1} parent=27 // pred_region
              %s159 = sshll.u32 1, %s148
              %s160 = ssub.s32 %s159, 1
              loop: start=0, step=1, limit=1
              $region37: #{prompt_add.1} parent=35 // loop_pre_header
                _
              $region38: #{prompt_add.1} parent=35 // loop_header
                %s162 = sphi 0, %s166
                %p163 = scmp.ge.s32.totalorder %s162, 1
                %s167 = sphi %s147, %s147
                %s168 = sphi %s136, %s136
              $region39: #{prompt_add.1} parent=35 // loop_header_branch
                %165 = sbr.rel (%p163) target = $region43
              $region40: #{prompt_add.1} parent=35 // loop_body
                %v169 = vld [vmem:[%s167] sm:%s160]
                %170 = vst [vmem:[%s168] sm:%s160] %v169
                %v171 = vld [vmem:[%s167 + $0x40] sm:%s160]
                %172 = vst [vmem:[%s168 + $0x30] sm:%s160] %v171
                %v173 = vld [vmem:[%s167 + $0x80] sm:%s160]
                %174 = vst [vmem:[%s168 + $0x60] sm:%s160] %v173
                %v175 = vld [vmem:[%s167 + $0xc0] sm:%s160]
                %176 = vst [vmem:[%s168 + $0x90] sm:%s160] %v175
                %v177 = vld [vmem:[%s167 + $0x100] sm:%s160]
                %178 = vst [vmem:[%s168 + $0xc0] sm:%s160] %v177
                %v179 = vld [vmem:[%s167 + $0x140] sm:%s160]
                %180 = vst [vmem:[%s168 + $0xf0] sm:%s160] %v179
                %v181 = vld [vmem:[%s167 + $0x180] sm:%s160]
                %182 = vst [vmem:[%s168 + $0x120] sm:%s160] %v181
                %v183 = vld [vmem:[%s167 + $0x1c0] sm:%s160]
                %184 = vst [vmem:[%s168 + $0x150] sm:%s160] %v183
                %v185 = vld [vmem:[%s167 + $0x200] sm:%s160]
                %186 = vst [vmem:[%s168 + $0x180] sm:%s160] %v185
                %v187 = vld [vmem:[%s167 + $0x240] sm:%s160]
                %188 = vst [vmem:[%s168 + $0x1b0] sm:%s160] %v187
                %v189 = vld [vmem:[%s167 + $0x280] sm:%s160]
                %190 = vst [vmem:[%s168 + $0x1e0] sm:%s160] %v189
                %v191 = vld [vmem:[%s167 + $0x2c0] sm:%s160]
                %192 = vst [vmem:[%s168 + $0x210] sm:%s160] %v191
                %v193 = vld [vmem:[%s167 + $0x300] sm:%s160]
                %194 = vst [vmem:[%s168 + $0x240] sm:%s160] %v193
                %v195 = vld [vmem:[%s167 + $0x340] sm:%s160]
                %196 = vst [vmem:[%s168 + $0x270] sm:%s160] %v195
                %v197 = vld [vmem:[%s167 + $0x380] sm:%s160]
                %198 = vst [vmem:[%s168 + $0x2a0] sm:%s160] %v197
                %v199 = vld [vmem:[%s167 + $0x3c0] sm:%s160]
                %200 = vst [vmem:[%s168 + $0x2d0] sm:%s160] %v199
              $region41: #{prompt_add.1} parent=35 // loop_footer
                %s166 = sadd.s32 1, %s162
              $region42: #{prompt_add.1} parent=35 // loop_footer_branch
                %161 = sbr.rel target = $region38
              $region43: #{prompt_add.1} parent=35 // loop_exit
                _
            $region36: #{prompt_add.1} parent=27 // pred_fallthru
              _
          $region28: #{prompt_add.1} parent=23 // pred_fallthru
            _
          %670 = vnop
        $region24: #{prompt_add.1} parent=19 // pred_fallthru
          _
      $region20: #{prompt_add.1} parent=5 // pred_fallthru
        _
      %p671 = scmp.le.s32.totalorder 1, %s8
      %p672 = scmp.lt.s32.totalorder %s8, 5
      %p673 = pnand %p671, %p672
      %p674 = pneg %p673
      // Predicated region
      $region87: #{prompt_add.1} parent=5 // pred_check
        _
      $region88: #{prompt_add.1} parent=5 // pred_check_branch
        %676 = sbr.rel (%p673) target = $region90
      $region89: #{prompt_add.1} parent=5 // pred_region
        %s677 = ssub.s32 %s8, 1
        %s678 = sand.u32 %s35, 1
        %s679 = sand.u32 %s35, 1
        %s680 = smul.addr %s679, 768
        %s681 = scalar_lea.vmem [#allocation2], %s680
        // Predicated region
        $region91: #{prompt_add.1} parent=89 // pred_check
          %p682 = pneg %p48
        $region92: #{prompt_add.1} parent=89 // pred_check_branch
          %684 = sbr.rel (%p682) target = $region94
        $region93: #{prompt_add.1} parent=89 // pred_region
          _
        $region94: #{prompt_add.1} parent=89 // pred_fallthru
          _
        %s685 = sand.u32 %s35, 1
        %s686 = sand.u32 %s35, 1
        %s687 = smul.addr %s686, 768
        %s688 = scalar_lea.vmem [#allocation2], %s687
        %p689 = pneg %p48
        %p690 = pneg %p45
        %s691 = smul.u32 6, %s18
        %p692 = scmp.lt.s32.totalorder %s691, 5
        %s693 = scalar_select %p692, %s691, 5
        %s694 = smul.addr %s693, 8
        %s695 = scalar_lea.vmem %s1, %s694
        %p696 = pneg %p74
        %p697 = pneg %p71
        %p698 = pneg %p102
        %p699 = pneg %p99
        %s700 = sand.u32 %s89, 1
        %s701 = sand.u32 %s89, 1
        %s702 = smul.addr %s701, 768
        %s703 = scalar_lea.vmem [#allocation3], %s702
        %s704 = smul.u32 2, %s17
        %s705 = smul.u32 6, %s18
        %s706 = ssub.s32 8, %s705
        %p707 = scmp.lt.s32.totalorder %s706, 6
        %s708 = scalar_select %p707, %s706, 6
        %s709 = smul.u32 2048, %s708
        %s710 = smul.u32 6, %s18
        %p711 = scmp.lt.s32.totalorder %s710, 5
        %s712 = scalar_select %p711, %s710, 5
        %s713 = smul.addr %s712, 8
        %s714 = scalar_lea.vmem %s1, %s713
        %s715 = smul.u32 6, %s18
        %s716 = smul.u32 2, %s17
        %s717 = smul.u32 6, %s18
        %s718 = ssub.s32 8, %s717
        %p719 = scmp.lt.s32.totalorder %s718, 6
        %s720 = scalar_select %p719, %s718, 6
        %s721 = smul.u32 2048, %s720
        %v722 = vld [vmem:[%s681] sm:$0xff]
        %v723 = vld [vmem:[%s681 + $0x8] sm:$0xff]
        %v724 = vld [vmem:[%s681 + $0x10] sm:$0xff]
        %v725 = vld [vmem:[%s681 + $0x18] sm:$0xff]
        %v726 = vld [vmem:[%s681 + $0x20] sm:$0xff]
        %v727 = vld [vmem:[%s681 + $0x28] sm:$0xff]
        %v728 = vld [vmem:[%s681 + $0x30] sm:$0xff]
        %v729 = vld [vmem:[%s681 + $0x38] sm:$0xff]
        %v730 = vld [vmem:[%s681 + $0x40] sm:$0xff]
        %v731 = vld [vmem:[%s681 + $0x48] sm:$0xff]
        %v732 = vld [vmem:[%s681 + $0x50] sm:$0xff]
        %v733 = vld [vmem:[%s681 + $0x58] sm:$0xff]
        %v734 = vld [vmem:[%s681 + $0x60] sm:$0xff]
        %v735 = vld [vmem:[%s681 + $0x68] sm:$0xff]
        %v736 = vld [vmem:[%s681 + $0x70] sm:$0xff]
        %v737 = vld [vmem:[%s681 + $0x78] sm:$0xff]
        %v738 = vld [vmem:[%s681 + $0x80] sm:$0xff]
        %v739 = vld [vmem:[%s681 + $0x88] sm:$0xff]
        %v740 = vld [vmem:[%s681 + $0x90] sm:$0xff]
        %v741 = vld [vmem:[%s681 + $0x98] sm:$0xff]
        %v742 = vld [vmem:[%s681 + $0xa0] sm:$0xff]
        %v743 = vld [vmem:[%s681 + $0xa8] sm:$0xff]
        %v744 = vld [vmem:[%s681 + $0xb0] sm:$0xff]
        %v745 = vld [vmem:[%s681 + $0xb8] sm:$0xff]
        %v746 = vld [vmem:[%s681 + $0xc0] sm:$0xff]
        %v747 = vld [vmem:[%s681 + $0xc8] sm:$0xff]
        %v748 = vld [vmem:[%s681 + $0xd0] sm:$0xff]
        %v749 = vld [vmem:[%s681 + $0xd8] sm:$0xff]
        %v750 = vld [vmem:[%s681 + $0xe0] sm:$0xff]
        %v751 = vld [vmem:[%s681 + $0xe8] sm:$0xff]
        %v752 = vld [vmem:[%s681 + $0xf0] sm:$0xff]
        %v753 = vld [vmem:[%s681 + $0xf8] sm:$0xff]
        %v754 = vld [vmem:[%s681 + $0x100] sm:$0xff]
        %v755 = vld [vmem:[%s681 + $0x108] sm:$0xff]
        %v756 = vld [vmem:[%s681 + $0x110] sm:$0xff]
        %v757 = vld [vmem:[%s681 + $0x118] sm:$0xff]
        %v758 = vld [vmem:[%s681 + $0x120] sm:$0xff]
        %v759 = vld [vmem:[%s681 + $0x128] sm:$0xff]
        %v760 = vld [vmem:[%s681 + $0x130] sm:$0xff]
        %v761 = vld [vmem:[%s681 + $0x138] sm:$0xff]
        %v762 = vld [vmem:[%s681 + $0x140] sm:$0xff]
        %v763 = vld [vmem:[%s681 + $0x148] sm:$0xff]
        %v764 = vld [vmem:[%s681 + $0x150] sm:$0xff]
        %v765 = vld [vmem:[%s681 + $0x158] sm:$0xff]
        %v766 = vld [vmem:[%s681 + $0x160] sm:$0xff]
        %v767 = vld [vmem:[%s681 + $0x168] sm:$0xff]
        %v768 = vld [vmem:[%s681 + $0x170] sm:$0xff]
        %v769 = vld [vmem:[%s681 + $0x178] sm:$0xff]
        %v770 = vld [vmem:[%s681 + $0x180] sm:$0xff]
        %v771 = vld [vmem:[%s681 + $0x188] sm:$0xff]
        %v772 = vld [vmem:[%s681 + $0x190] sm:$0xff]
        %v773 = vld [vmem:[%s681 + $0x198] sm:$0xff]
        %v774 = vld [vmem:[%s681 + $0x1a0] sm:$0xff]
        %v775 = vld [vmem:[%s681 + $0x1a8] sm:$0xff]
        %v776 = vld [vmem:[%s681 + $0x1b0] sm:$0xff]
        %v777 = vld [vmem:[%s681 + $0x1b8] sm:$0xff]
        %v778 = vld [vmem:[%s681 + $0x1c0] sm:$0xff]
        %v779 = vld [vmem:[%s681 + $0x1c8] sm:$0xff]
        %v780 = vld [vmem:[%s681 + $0x1d0] sm:$0xff]
        %v781 = vld [vmem:[%s681 + $0x1d8] sm:$0xff]
        %v782 = vld [vmem:[%s681 + $0x1e0] sm:$0xff]
        %v783 = vld [vmem:[%s681 + $0x1e8] sm:$0xff]
        %v784 = vld [vmem:[%s681 + $0x1f0] sm:$0xff]
        %v785 = vld [vmem:[%s681 + $0x1f8] sm:$0xff]
        %v786 = vld [vmem:[%s681 + $0x200] sm:$0xff]
        %v787 = vld [vmem:[%s681 + $0x208] sm:$0xff]
        %v788 = vld [vmem:[%s681 + $0x210] sm:$0xff]
        %v789 = vld [vmem:[%s681 + $0x218] sm:$0xff]
        %v790 = vld [vmem:[%s681 + $0x220] sm:$0xff]
        %v791 = vld [vmem:[%s681 + $0x228] sm:$0xff]
        %v792 = vld [vmem:[%s681 + $0x230] sm:$0xff]
        %v793 = vld [vmem:[%s681 + $0x238] sm:$0xff]
        %v794 = vld [vmem:[%s681 + $0x240] sm:$0xff]
        %v795 = vld [vmem:[%s681 + $0x248] sm:$0xff]
        %v796 = vld [vmem:[%s681 + $0x250] sm:$0xff]
        %v797 = vld [vmem:[%s681 + $0x258] sm:$0xff]
        %v798 = vld [vmem:[%s681 + $0x260] sm:$0xff]
        %v799 = vld [vmem:[%s681 + $0x268] sm:$0xff]
        %v800 = vld [vmem:[%s681 + $0x270] sm:$0xff]
        %v801 = vld [vmem:[%s681 + $0x278] sm:$0xff]
        %v802 = vld [vmem:[%s681 + $0x280] sm:$0xff]
        %v803 = vld [vmem:[%s681 + $0x288] sm:$0xff]
        %v804 = vld [vmem:[%s681 + $0x290] sm:$0xff]
        %v805 = vld [vmem:[%s681 + $0x298] sm:$0xff]
        %v806 = vld [vmem:[%s681 + $0x2a0] sm:$0xff]
        %v807 = vld [vmem:[%s681 + $0x2a8] sm:$0xff]
        %v808 = vld [vmem:[%s681 + $0x2b0] sm:$0xff]
        %v809 = vld [vmem:[%s681 + $0x2b8] sm:$0xff]
        %v810 = vld [vmem:[%s681 + $0x2c0] sm:$0xff]
        %v811 = vld [vmem:[%s681 + $0x2c8] sm:$0xff]
        %v812 = vld [vmem:[%s681 + $0x2d0] sm:$0xff]
        %v813 = vld [vmem:[%s681 + $0x2d8] sm:$0xff]
        %v814 = vld [vmem:[%s681 + $0x2e0] sm:$0xff]
        %v815 = vld [vmem:[%s681 + $0x2e8] sm:$0xff]
        %v816 = vld [vmem:[%s681 + $0x2f0] sm:$0xff]
        %v817 = vld [vmem:[%s681 + $0x2f8] sm:$0xff]
        %v818 = vld [vmem:[%s714] sm:$0xff]
        %v819 = vld [vmem:[%s714 + $0x8] sm:$0xff]
        %v820 = vld [vmem:[%s714 + $0x10] sm:$0xff]
        %v821 = vld [vmem:[%s714 + $0x18] sm:$0xff]
        %v822 = vld [vmem:[%s714 + $0x20] sm:$0xff]
        %v823 = vld [vmem:[%s714 + $0x28] sm:$0xff]
        %v824 = vld [vmem:[%s714 + $0x30] sm:$0xff]
        %v825 = vld [vmem:[%s714 + $0x38] sm:$0xff]
        %v826 = vld [vmem:[%s714 + $0x40] sm:$0xff]
        %v827 = vld [vmem:[%s714 + $0x48] sm:$0xff]
        %v828 = vld [vmem:[%s714 + $0x50] sm:$0xff]
        %v829 = vld [vmem:[%s714 + $0x58] sm:$0xff]
        %v830 = vld [vmem:[%s714 + $0x60] sm:$0xff]
        %v831 = vld [vmem:[%s714 + $0x68] sm:$0xff]
        %v832 = vld [vmem:[%s714 + $0x70] sm:$0xff]
        %v833 = vld [vmem:[%s714 + $0x78] sm:$0xff]
        %v834 = vld [vmem:[%s714 + $0x80] sm:$0xff]
        %v835 = vld [vmem:[%s714 + $0x88] sm:$0xff]
        %v836 = vld [vmem:[%s714 + $0x90] sm:$0xff]
        %v837 = vld [vmem:[%s714 + $0x98] sm:$0xff]
        %v838 = vld [vmem:[%s714 + $0xa0] sm:$0xff]
        %v839 = vld [vmem:[%s714 + $0xa8] sm:$0xff]
        %v840 = vld [vmem:[%s714 + $0xb0] sm:$0xff]
        %v841 = vld [vmem:[%s714 + $0xb8] sm:$0xff]
        %v842 = vld [vmem:[%s714 + $0xc0] sm:$0xff]
        %v843 = vld [vmem:[%s714 + $0xc8] sm:$0xff]
        %v844 = vld [vmem:[%s714 + $0xd0] sm:$0xff]
        %v845 = vld [vmem:[%s714 + $0xd8] sm:$0xff]
        %v846 = vld [vmem:[%s714 + $0xe0] sm:$0xff]
        %v847 = vld [vmem:[%s714 + $0xe8] sm:$0xff]
        %v848 = vld [vmem:[%s714 + $0xf0] sm:$0xff]
        %v849 = vld [vmem:[%s714 + $0xf8] sm:$0xff]
        %v850 = vld [vmem:[%s714 + $0x100] sm:$0xff]
        %v851 = vld [vmem:[%s714 + $0x108] sm:$0xff]
        %v852 = vld [vmem:[%s714 + $0x110] sm:$0xff]
        %v853 = vld [vmem:[%s714 + $0x118] sm:$0xff]
        %v854 = vld [vmem:[%s714 + $0x120] sm:$0xff]
        %v855 = vld [vmem:[%s714 + $0x128] sm:$0xff]
        %v856 = vld [vmem:[%s714 + $0x130] sm:$0xff]
        %v857 = vld [vmem:[%s714 + $0x138] sm:$0xff]
        %v858 = vld [vmem:[%s714 + $0x140] sm:$0xff]
        %v859 = vld [vmem:[%s714 + $0x148] sm:$0xff]
        %v860 = vld [vmem:[%s714 + $0x150] sm:$0xff]
        %v861 = vld [vmem:[%s714 + $0x158] sm:$0xff]
        %v862 = vld [vmem:[%s714 + $0x160] sm:$0xff]
        %v863 = vld [vmem:[%s714 + $0x168] sm:$0xff]
        %v864 = vld [vmem:[%s714 + $0x170] sm:$0xff]
        %v865 = vld [vmem:[%s714 + $0x178] sm:$0xff]
        %v866 = vadd.f32 %v722, %v818
        %v867 = vadd.f32 %v723, %v819
        %v868 = vadd.f32 %v724, %v820
        %v869 = vadd.f32 %v725, %v821
        %v870 = vadd.f32 %v726, %v822
        %v871 = vadd.f32 %v727, %v823
        %v872 = vadd.f32 %v728, %v824
        %v873 = vadd.f32 %v729, %v825
        %v874 = vadd.f32 %v730, %v826
        %v875 = vadd.f32 %v731, %v827
        %v876 = vadd.f32 %v732, %v828
        %v877 = vadd.f32 %v733, %v829
        %v878 = vadd.f32 %v734, %v830
        %v879 = vadd.f32 %v735, %v831
        %v880 = vadd.f32 %v736, %v832
        %v881 = vadd.f32 %v737, %v833
        %v882 = vadd.f32 %v738, %v834
        %v883 = vadd.f32 %v739, %v835
        %v884 = vadd.f32 %v740, %v836
        %v885 = vadd.f32 %v741, %v837
        %v886 = vadd.f32 %v742, %v838
        %v887 = vadd.f32 %v743, %v839
        %v888 = vadd.f32 %v744, %v840
        %v889 = vadd.f32 %v745, %v841
        %v890 = vadd.f32 %v746, %v842
        %v891 = vadd.f32 %v747, %v843
        %v892 = vadd.f32 %v748, %v844
        %v893 = vadd.f32 %v749, %v845
        %v894 = vadd.f32 %v750, %v846
        %v895 = vadd.f32 %v751, %v847
        %v896 = vadd.f32 %v752, %v848
        %v897 = vadd.f32 %v753, %v849
        %v898 = vadd.f32 %v754, %v850
        %v899 = vadd.f32 %v755, %v851
        %v900 = vadd.f32 %v756, %v852
        %v901 = vadd.f32 %v757, %v853
        %v902 = vadd.f32 %v758, %v854
        %v903 = vadd.f32 %v759, %v855
        %v904 = vadd.f32 %v760, %v856
        %v905 = vadd.f32 %v761, %v857
        %v906 = vadd.f32 %v762, %v858
        %v907 = vadd.f32 %v763, %v859
        %v908 = vadd.f32 %v764, %v860
        %v909 = vadd.f32 %v765, %v861
        %v910 = vadd.f32 %v766, %v862
        %v911 = vadd.f32 %v767, %v863
        %v912 = vadd.f32 %v768, %v864
        %v913 = vadd.f32 %v769, %v865
        %v914 = vadd.f32 %v770, %v818
        %v915 = vadd.f32 %v771, %v819
        %v916 = vadd.f32 %v772, %v820
        %v917 = vadd.f32 %v773, %v821
        %v918 = vadd.f32 %v774, %v822
        %v919 = vadd.f32 %v775, %v823
        %v920 = vadd.f32 %v776, %v824
        %v921 = vadd.f32 %v777, %v825
        %v922 = vadd.f32 %v778, %v826
        %v923 = vadd.f32 %v779, %v827
        %v924 = vadd.f32 %v780, %v828
        %v925 = vadd.f32 %v781, %v829
        %v926 = vadd.f32 %v782, %v830
        %v927 = vadd.f32 %v783, %v831
        %v928 = vadd.f32 %v784, %v832
        %v929 = vadd.f32 %v785, %v833
        %v930 = vadd.f32 %v786, %v834
        %v931 = vadd.f32 %v787, %v835
        %v932 = vadd.f32 %v788, %v836
        %v933 = vadd.f32 %v789, %v837
        %v934 = vadd.f32 %v790, %v838
        %v935 = vadd.f32 %v791, %v839
        %v936 = vadd.f32 %v792, %v840
        %v937 = vadd.f32 %v793, %v841
        %v938 = vadd.f32 %v794, %v842
        %v939 = vadd.f32 %v795, %v843
        %v940 = vadd.f32 %v796, %v844
        %v941 = vadd.f32 %v797, %v845
        %v942 = vadd.f32 %v798, %v846
        %v943 = vadd.f32 %v799, %v847
        %v944 = vadd.f32 %v800, %v848
        %v945 = vadd.f32 %v801, %v849
        %v946 = vadd.f32 %v802, %v850
        %v947 = vadd.f32 %v803, %v851
        %v948 = vadd.f32 %v804, %v852
        %v949 = vadd.f32 %v805, %v853
        %v950 = vadd.f32 %v806, %v854
        %v951 = vadd.f32 %v807, %v855
        %v952 = vadd.f32 %v808, %v856
        %v953 = vadd.f32 %v809, %v857
        %v954 = vadd.f32 %v810, %v858
        %v955 = vadd.f32 %v811, %v859
        %v956 = vadd.f32 %v812, %v860
        %v957 = vadd.f32 %v813, %v861
        %v958 = vadd.f32 %v814, %v862
        %v959 = vadd.f32 %v815, %v863
        %v960 = vadd.f32 %v816, %v864
        %v961 = vadd.f32 %v817, %v865
        %962 = vst [vmem:[%s703] sm:$0xff] %v866
        %963 = vst [vmem:[%s703 + $0x8] sm:$0xff] %v867
        %964 = vst [vmem:[%s703 + $0x10] sm:$0xff] %v868
        %965 = vst [vmem:[%s703 + $0x18] sm:$0xff] %v869
        %966 = vst [vmem:[%s703 + $0x20] sm:$0xff] %v870
        %967 = vst [vmem:[%s703 + $0x28] sm:$0xff] %v871
        %968 = vst [vmem:[%s703 + $0x30] sm:$0xff] %v872
        %969 = vst [vmem:[%s703 + $0x38] sm:$0xff] %v873
        %970 = vst [vmem:[%s703 + $0x40] sm:$0xff] %v874
        %971 = vst [vmem:[%s703 + $0x48] sm:$0xff] %v875
        %972 = vst [vmem:[%s703 + $0x50] sm:$0xff] %v876
        %973 = vst [vmem:[%s703 + $0x58] sm:$0xff] %v877
        %974 = vst [vmem:[%s703 + $0x60] sm:$0xff] %v878
        %975 = vst [vmem:[%s703 + $0x68] sm:$0xff] %v879
        %976 = vst [vmem:[%s703 + $0x70] sm:$0xff] %v880
        %977 = vst [vmem:[%s703 + $0x78] sm:$0xff] %v881
        %978 = vst [vmem:[%s703 + $0x80] sm:$0xff] %v882
        %979 = vst [vmem:[%s703 + $0x88] sm:$0xff] %v883
        %980 = vst [vmem:[%s703 + $0x90] sm:$0xff] %v884
        %981 = vst [vmem:[%s703 + $0x98] sm:$0xff] %v885
        %982 = vst [vmem:[%s703 + $0xa0] sm:$0xff] %v886
        %983 = vst [vmem:[%s703 + $0xa8] sm:$0xff] %v887
        %984 = vst [vmem:[%s703 + $0xb0] sm:$0xff] %v888
        %985 = vst [vmem:[%s703 + $0xb8] sm:$0xff] %v889
        %986 = vst [vmem:[%s703 + $0xc0] sm:$0xff] %v890
        %987 = vst [vmem:[%s703 + $0xc8] sm:$0xff] %v891
        %988 = vst [vmem:[%s703 + $0xd0] sm:$0xff] %v892
        %989 = vst [vmem:[%s703 + $0xd8] sm:$0xff] %v893
        %990 = vst [vmem:[%s703 + $0xe0] sm:$0xff] %v894
        %991 = vst [vmem:[%s703 + $0xe8] sm:$0xff] %v895
        %992 = vst [vmem:[%s703 + $0xf0] sm:$0xff] %v896
        %993 = vst [vmem:[%s703 + $0xf8] sm:$0xff] %v897
        %994 = vst [vmem:[%s703 + $0x100] sm:$0xff] %v898
        %995 = vst [vmem:[%s703 + $0x108] sm:$0xff] %v899
        %996 = vst [vmem:[%s703 + $0x110] sm:$0xff] %v900
        %997 = vst [vmem:[%s703 + $0x118] sm:$0xff] %v901
        %998 = vst [vmem:[%s703 + $0x120] sm:$0xff] %v902
        %999 = vst [vmem:[%s703 + $0x128] sm:$0xff] %v903
        %1000 = vst [vmem:[%s703 + $0x130] sm:$0xff] %v904
        %1001 = vst [vmem:[%s703 + $0x138] sm:$0xff] %v905
        %1002 = vst [vmem:[%s703 + $0x140] sm:$0xff] %v906
        %1003 = vst [vmem:[%s703 + $0x148] sm:$0xff] %v907
        %1004 = vst [vmem:[%s703 + $0x150] sm:$0xff] %v908
        %1005 = vst [vmem:[%s703 + $0x158] sm:$0xff] %v909
        %1006 = vst [vmem:[%s703 + $0x160] sm:$0xff] %v910
        %1007 = vst [vmem:[%s703 + $0x168] sm:$0xff] %v911
        %1008 = vst [vmem:[%s703 + $0x170] sm:$0xff] %v912
        %1009 = vst [vmem:[%s703 + $0x178] sm:$0xff] %v913
        %1010 = vst [vmem:[%s703 + $0x180] sm:$0xff] %v914
        %1011 = vst [vmem:[%s703 + $0x188] sm:$0xff] %v915
        %1012 = vst [vmem:[%s703 + $0x190] sm:$0xff] %v916
        %1013 = vst [vmem:[%s703 + $0x198] sm:$0xff] %v917
        %1014 = vst [vmem:[%s703 + $0x1a0] sm:$0xff] %v918
        %1015 = vst [vmem:[%s703 + $0x1a8] sm:$0xff] %v919
        %1016 = vst [vmem:[%s703 + $0x1b0] sm:$0xff] %v920
        %1017 = vst [vmem:[%s703 + $0x1b8] sm:$0xff] %v921
        %1018 = vst [vmem:[%s703 + $0x1c0] sm:$0xff] %v922
        %1019 = vst [vmem:[%s703 + $0x1c8] sm:$0xff] %v923
        %1020 = vst [vmem:[%s703 + $0x1d0] sm:$0xff] %v924
        %1021 = vst [vmem:[%s703 + $0x1d8] sm:$0xff] %v925
        %1022 = vst [vmem:[%s703 + $0x1e0] sm:$0xff] %v926
        %1023 = vst [vmem:[%s703 + $0x1e8] sm:$0xff] %v927
        %1024 = vst [vmem:[%s703 + $0x1f0] sm:$0xff] %v928
        %1025 = vst [vmem:[%s703 + $0x1f8] sm:$0xff] %v929
        %1026 = vst [vmem:[%s703 + $0x200] sm:$0xff] %v930
        %1027 = vst [vmem:[%s703 + $0x208] sm:$0xff] %v931
        %1028 = vst [vmem:[%s703 + $0x210] sm:$0xff] %v932
        %1029 = vst [vmem:[%s703 + $0x218] sm:$0xff] %v933
        %1030 = vst [vmem:[%s703 + $0x220] sm:$0xff] %v934
        %1031 = vst [vmem:[%s703 + $0x228] sm:$0xff] %v935
        %1032 = vst [vmem:[%s703 + $0x230] sm:$0xff] %v936
        %1033 = vst [vmem:[%s703 + $0x238] sm:$0xff] %v937
        %1034 = vst [vmem:[%s703 + $0x240] sm:$0xff] %v938
        %1035 = vst [vmem:[%s703 + $0x248] sm:$0xff] %v939
        %1036 = vst [vmem:[%s703 + $0x250] sm:$0xff] %v940
        %1037 = vst [vmem:[%s703 + $0x258] sm:$0xff] %v941
        %1038 = vst [vmem:[%s703 + $0x260] sm:$0xff] %v942
        %1039 = vst [vmem:[%s703 + $0x268] sm:$0xff] %v943
        %1040 = vst [vmem:[%s703 + $0x270] sm:$0xff] %v944
        %1041 = vst [vmem:[%s703 + $0x278] sm:$0xff] %v945
        %1042 = vst [vmem:[%s703 + $0x280] sm:$0xff] %v946
        %1043 = vst [vmem:[%s703 + $0x288] sm:$0xff] %v947
        %1044 = vst [vmem:[%s703 + $0x290] sm:$0xff] %v948
        %1045 = vst [vmem:[%s703 + $0x298] sm:$0xff] %v949
        %1046 = vst [vmem:[%s703 + $0x2a0] sm:$0xff] %v950
        %1047 = vst [vmem:[%s703 + $0x2a8] sm:$0xff] %v951
        %1048 = vst [vmem:[%s703 + $0x2b0] sm:$0xff] %v952
        %1049 = vst [vmem:[%s703 + $0x2b8] sm:$0xff] %v953
        %1050 = vst [vmem:[%s703 + $0x2c0] sm:$0xff] %v954
        %1051 = vst [vmem:[%s703 + $0x2c8] sm:$0xff] %v955
        %1052 = vst [vmem:[%s703 + $0x2d0] sm:$0xff] %v956
        %1053 = vst [vmem:[%s703 + $0x2d8] sm:$0xff] %v957
        %1054 = vst [vmem:[%s703 + $0x2e0] sm:$0xff] %v958
        %1055 = vst [vmem:[%s703 + $0x2e8] sm:$0xff] %v959
        %1056 = vst [vmem:[%s703 + $0x2f0] sm:$0xff] %v960
        %1057 = vst [vmem:[%s703 + $0x2f8] sm:$0xff] %v961
        %s1058 = sand.u32 %s89, 1
        %s1059 = sand.u32 %s89, 1
        %s1060 = smul.addr %s1059, 768
        %s1061 = scalar_lea.vmem [#allocation3], %s1060
        // Predicated region
        $region95: #{prompt_add.1} parent=89 // pred_check
          %p1062 = pneg %p99
        $region96: #{prompt_add.1} parent=89 // pred_check_branch
          %1064 = sbr.rel (%p1062) target = $region98
        $region97: #{prompt_add.1} parent=89 // pred_region
          %s1065 = smul.u32 2, %s17
          %s1066 = smul.u32 6, %s18
          %s1067 = ssub.s32 8, %s1066
          %p1068 = scmp.lt.s32.totalorder %s1067, 6
          %s1069 = scalar_select %p1068, %s1067, 6
          %s1070 = smul.u32 2048, %s1069
          %p1071 = scmp.ne.s32.totalorder 0, %s1070
          %s1072 = smul.addr %s1065, 64
          %s1073 = sadd.s32 %s1066, %s1072
          %s1074 = smul.addr %s1073, 8
          %s1075 = scalar_lea.vmem %s2, %s1074
          %s1076 = smul.u32 %s1069, 8
          // Predicated region
          $region99: #{prompt_add.1} parent=97 // pred_check
            %p1077 = pneg %p1071
          $region100: #{prompt_add.1} parent=97 // pred_check_branch
            %1079 = sbr.rel (%p1077) target = $region102
          $region101: #{prompt_add.1} parent=97 // pred_region
            %p1080 = scmp.lt.u32.totalorder %s1076, 8
            %p1081 = pneg %p1080
            // Predicated region
            $region103: #{prompt_add.1} parent=101 // pred_check
              _
            $region104: #{prompt_add.1} parent=101 // pred_check_branch
              %1083 = sbr.rel (%p1080) target = $region106
            $region105: #{prompt_add.1} parent=101 // pred_region
              %s1129 = sand.u32 %s1076, 7
              %p1130 = scmp.eq.s32.totalorder %s1129, 0
              // Predicated region
              $region118: #{prompt_add.1} parent=105 // pred_check
                %p1131 = pneg %p1130
              $region119: #{prompt_add.1} parent=105 // pred_check_branch
                %1133 = sbr.rel (%p1131) target = $region121
              $region120: #{prompt_add.1} parent=105 // pred_region
                %s1134 = sshrl.u32 %s1076, 3
                %s1135 = sshrl.u32 %s1134, 2
                // While loop
                $region122: #{prompt_add.1} parent=120 // loop_pre_header
                  _
                $region123: #{prompt_add.1} parent=120 // loop_header
                  %s1139 = sphi 0, %s1141
                  %p1140 = scmp.ge.s32.totalorder %s1139, %s1135
                  %s1144 = sphi 0, %s1277
                  %s1145 = sphi %s1061, %s1280
                  %s1146 = sphi %s1075, %s1281
                $region124: #{prompt_add.1} parent=120 // loop_header_branch
                  %1143 = sbr.rel (%p1140) target = $region128
                $region125: #{prompt_add.1} parent=120 // loop_body
                  %v1147 = vld [vmem:[%s1145] sm:$0xff]
                  %1148 = vst [vmem:[%s1146] sm:$0xff] %v1147
                  %v1149 = vld [vmem:[%s1145 + $0x8] sm:$0xff]
                  %1150 = vst [vmem:[%s1146 + $0x8] sm:$0xff] %v1149
                  %v1151 = vld [vmem:[%s1145 + $0x10] sm:$0xff]
                  %1152 = vst [vmem:[%s1146 + $0x10] sm:$0xff] %v1151
                  %v1153 = vld [vmem:[%s1145 + $0x18] sm:$0xff]
                  %1154 = vst [vmem:[%s1146 + $0x18] sm:$0xff] %v1153
                  %v1155 = vld [vmem:[%s1145 + $0x30] sm:$0xff]
                  %1156 = vst [vmem:[%s1146 + $0x40] sm:$0xff] %v1155
                  %v1157 = vld [vmem:[%s1145 + $0x38] sm:$0xff]
                  %1158 = vst [vmem:[%s1146 + $0x48] sm:$0xff] %v1157
                  %v1159 = vld [vmem:[%s1145 + $0x40] sm:$0xff]
                  %1160 = vst [vmem:[%s1146 + $0x50] sm:$0xff] %v1159
                  %v1161 = vld [vmem:[%s1145 + $0x48] sm:$0xff]
                  %1162 = vst [vmem:[%s1146 + $0x58] sm:$0xff] %v1161
                  %v1163 = vld [vmem:[%s1145 + $0x60] sm:$0xff]
                  %1164 = vst [vmem:[%s1146 + $0x80] sm:$0xff] %v1163
                  %v1165 = vld [vmem:[%s1145 + $0x68] sm:$0xff]
                  %1166 = vst [vmem:[%s1146 + $0x88] sm:$0xff] %v1165
                  %v1167 = vld [vmem:[%s1145 + $0x70] sm:$0xff]
                  %1168 = vst [vmem:[%s1146 + $0x90] sm:$0xff] %v1167
                  %v1169 = vld [vmem:[%s1145 + $0x78] sm:$0xff]
                  %1170 = vst [vmem:[%s1146 + $0x98] sm:$0xff] %v1169
                  %v1171 = vld [vmem:[%s1145 + $0x90] sm:$0xff]
                  %1172 = vst [vmem:[%s1146 + $0xc0] sm:$0xff] %v1171
                  %v1173 = vld [vmem:[%s1145 + $0x98] sm:$0xff]
                  %1174 = vst [vmem:[%s1146 + $0xc8] sm:$0xff] %v1173
                  %v1175 = vld [vmem:[%s1145 + $0xa0] sm:$0xff]
                  %1176 = vst [vmem:[%s1146 + $0xd0] sm:$0xff] %v1175
                  %v1177 = vld [vmem:[%s1145 + $0xa8] sm:$0xff]
                  %1178 = vst [vmem:[%s1146 + $0xd8] sm:$0xff] %v1177
                  %v1179 = vld [vmem:[%s1145 + $0xc0] sm:$0xff]
                  %1180 = vst [vmem:[%s1146 + $0x100] sm:$0xff] %v1179
                  %v1181 = vld [vmem:[%s1145 + $0xc8] sm:$0xff]
                  %1182 = vst [vmem:[%s1146 + $0x108] sm:$0xff] %v1181
                  %v1183 = vld [vmem:[%s1145 + $0xd0] sm:$0xff]
                  %1184 = vst [vmem:[%s1146 + $0x110] sm:$0xff] %v1183
                  %v1185 = vld [vmem:[%s1145 + $0xd8] sm:$0xff]
                  %1186 = vst [vmem:[%s1146 + $0x118] sm:$0xff] %v1185
                  %v1187 = vld [vmem:[%s1145 + $0xf0] sm:$0xff]
                  %1188 = vst [vmem:[%s1146 + $0x140] sm:$0xff] %v1187
                  %v1189 = vld [vmem:[%s1145 + $0xf8] sm:$0xff]
                  %1190 = vst [vmem:[%s1146 + $0x148] sm:$0xff] %v1189
                  %v1191 = vld [vmem:[%s1145 + $0x100] sm:$0xff]
                  %1192 = vst [vmem:[%s1146 + $0x150] sm:$0xff] %v1191
                  %v1193 = vld [vmem:[%s1145 + $0x108] sm:$0xff]
                  %1194 = vst [vmem:[%s1146 + $0x158] sm:$0xff] %v1193
                  %v1195 = vld [vmem:[%s1145 + $0x120] sm:$0xff]
                  %1196 = vst [vmem:[%s1146 + $0x180] sm:$0xff] %v1195
                  %v1197 = vld [vmem:[%s1145 + $0x128] sm:$0xff]
                  %1198 = vst [vmem:[%s1146 + $0x188] sm:$0xff] %v1197
                  %v1199 = vld [vmem:[%s1145 + $0x130] sm:$0xff]
                  %1200 = vst [vmem:[%s1146 + $0x190] sm:$0xff] %v1199
                  %v1201 = vld [vmem:[%s1145 + $0x138] sm:$0xff]
                  %1202 = vst [vmem:[%s1146 + $0x198] sm:$0xff] %v1201
                  %v1203 = vld [vmem:[%s1145 + $0x150] sm:$0xff]
                  %1204 = vst [vmem:[%s1146 + $0x1c0] sm:$0xff] %v1203
                  %v1205 = vld [vmem:[%s1145 + $0x158] sm:$0xff]
                  %1206 = vst [vmem:[%s1146 + $0x1c8] sm:$0xff] %v1205
                  %v1207 = vld [vmem:[%s1145 + $0x160] sm:$0xff]
                  %1208 = vst [vmem:[%s1146 + $0x1d0] sm:$0xff] %v1207
                  %v1209 = vld [vmem:[%s1145 + $0x168] sm:$0xff]
                  %1210 = vst [vmem:[%s1146 + $0x1d8] sm:$0xff] %v1209
                  %v1211 = vld [vmem:[%s1145 + $0x180] sm:$0xff]
                  %1212 = vst [vmem:[%s1146 + $0x200] sm:$0xff] %v1211
                  %v1213 = vld [vmem:[%s1145 + $0x188] sm:$0xff]
                  %1214 = vst [vmem:[%s1146 + $0x208] sm:$0xff] %v1213
                  %v1215 = vld [vmem:[%s1145 + $0x190] sm:$0xff]
                  %1216 = vst [vmem:[%s1146 + $0x210] sm:$0xff] %v1215
                  %v1217 = vld [vmem:[%s1145 + $0x198] sm:$0xff]
                  %1218 = vst [vmem:[%s1146 + $0x218] sm:$0xff] %v1217
                  %v1219 = vld [vmem:[%s1145 + $0x1b0] sm:$0xff]
                  %1220 = vst [vmem:[%s1146 + $0x240] sm:$0xff] %v1219
                  %v1221 = vld [vmem:[%s1145 + $0x1b8] sm:$0xff]
                  %1222 = vst [vmem:[%s1146 + $0x248] sm:$0xff] %v1221
                  %v1223 = vld [vmem:[%s1145 + $0x1c0] sm:$0xff]
                  %1224 = vst [vmem:[%s1146 + $0x250] sm:$0xff] %v1223
                  %v1225 = vld [vmem:[%s1145 + $0x1c8] sm:$0xff]
                  %1226 = vst [vmem:[%s1146 + $0x258] sm:$0xff] %v1225
                  %v1227 = vld [vmem:[%s1145 + $0x1e0] sm:$0xff]
                  %1228 = vst [vmem:[%s1146 + $0x280] sm:$0xff] %v1227
                  %v1229 = vld [vmem:[%s1145 + $0x1e8] sm:$0xff]
                  %1230 = vst [vmem:[%s1146 + $0x288] sm:$0xff] %v1229
                  %v1231 = vld [vmem:[%s1145 + $0x1f0] sm:$0xff]
                  %1232 = vst [vmem:[%s1146 + $0x290] sm:$0xff] %v1231
                  %v1233 = vld [vmem:[%s1145 + $0x1f8] sm:$0xff]
                  %1234 = vst [vmem:[%s1146 + $0x298] sm:$0xff] %v1233
                  %v1235 = vld [vmem:[%s1145 + $0x210] sm:$0xff]
                  %1236 = vst [vmem:[%s1146 + $0x2c0] sm:$0xff] %v1235
                  %v1237 = vld [vmem:[%s1145 + $0x218] sm:$0xff]
                  %1238 = vst [vmem:[%s1146 + $0x2c8] sm:$0xff] %v1237
                  %v1239 = vld [vmem:[%s1145 + $0x220] sm:$0xff]
                  %1240 = vst [vmem:[%s1146 + $0x2d0] sm:$0xff] %v1239
                  %v1241 = vld [vmem:[%s1145 + $0x228] sm:$0xff]
                  %1242 = vst [vmem:[%s1146 + $0x2d8] sm:$0xff] %v1241
                  %v1243 = vld [vmem:[%s1145 + $0x240] sm:$0xff]
                  %1244 = vst [vmem:[%s1146 + $0x300] sm:$0xff] %v1243
                  %v1245 = vld [vmem:[%s1145 + $0x248] sm:$0xff]
                  %1246 = vst [vmem:[%s1146 + $0x308] sm:$0xff] %v1245
                  %v1247 = vld [vmem:[%s1145 + $0x250] sm:$0xff]
                  %1248 = vst [vmem:[%s1146 + $0x310] sm:$0xff] %v1247
                  %v1249 = vld [vmem:[%s1145 + $0x258] sm:$0xff]
                  %1250 = vst [vmem:[%s1146 + $0x318] sm:$0xff] %v1249
                  %v1251 = vld [vmem:[%s1145 + $0x270] sm:$0xff]
                  %1252 = vst [vmem:[%s1146 + $0x340] sm:$0xff] %v1251
                  %v1253 = vld [vmem:[%s1145 + $0x278] sm:$0xff]
                  %1254 = vst [vmem:[%s1146 + $0x348] sm:$0xff] %v1253
                  %v1255 = vld [vmem:[%s1145 + $0x280] sm:$0xff]
                  %1256 = vst [vmem:[%s1146 + $0x350] sm:$0xff] %v1255
                  %v1257 = vld [vmem:[%s1145 + $0x288] sm:$0xff]
                  %1258 = vst [vmem:[%s1146 + $0x358] sm:$0xff] %v1257
                  %v1259 = vld [vmem:[%s1145 + $0x2a0] sm:$0xff]
                  %1260 = vst [vmem:[%s1146 + $0x380] sm:$0xff] %v1259
                  %v1261 = vld [vmem:[%s1145 + $0x2a8] sm:$0xff]
                  %1262 = vst [vmem:[%s1146 + $0x388] sm:$0xff] %v1261
                  %v1263 = vld [vmem:[%s1145 + $0x2b0] sm:$0xff]
                  %1264 = vst [vmem:[%s1146 + $0x390] sm:$0xff] %v1263
                  %v1265 = vld [vmem:[%s1145 + $0x2b8] sm:$0xff]
                  %1266 = vst [vmem:[%s1146 + $0x398] sm:$0xff] %v1265
                  %v1267 = vld [vmem:[%s1145 + $0x2d0] sm:$0xff]
                  %1268 = vst [vmem:[%s1146 + $0x3c0] sm:$0xff] %v1267
                  %v1269 = vld [vmem:[%s1145 + $0x2d8] sm:$0xff]
                  %1270 = vst [vmem:[%s1146 + $0x3c8] sm:$0xff] %v1269
                  %v1271 = vld [vmem:[%s1145 + $0x2e0] sm:$0xff]
                  %1272 = vst [vmem:[%s1146 + $0x3d0] sm:$0xff] %v1271
                  %v1273 = vld [vmem:[%s1145 + $0x2e8] sm:$0xff]
                  %1274 = vst [vmem:[%s1146 + $0x3d8] sm:$0xff] %v1273
                  %s1275 = sadd.s32 1, %s1144
                  %p1276 = scmp.ge.s32.totalorder %s1275, %s1135
                  %s1277 = scalar_select %p1276, 0, %s1275
                  %s1278 = smul.u32 %s1277, 32
                  %s1279 = smul.u32 %s1277, 32
                  %s1280 = scalar_lea.vmem %s1061, %s1278 [#allocation3]
                  %s1281 = scalar_lea.vmem %s1075, %s1279
                $region126: #{prompt_add.1} parent=120 // loop_footer
                  %s1141 = sadd.s32 %s1139, 1
                $region127: #{prompt_add.1} parent=120 // loop_footer_branch
                  %1138 = sbr.rel target = $region123
                $region128: #{prompt_add.1} parent=120 // loop_exit
                  _
                %s1282 = sshrl.u32 %s1134, 2
                %s1283 = sand.u32 %s1134, 3
                %s1284 = smul.u32 %s1282, 4
                %s1285 = smul.u32 128, %s1284
                %s1286 = sshra.s32 %s1285, 4
                %s1287 = scalar_lea.vmem %s1061, %s1286 [#allocation3]
                %s1288 = smul.u32 128, %s1284
                %s1289 = sshra.s32 %s1288, 4
                %s1290 = scalar_lea.vmem %s1075, %s1289
                // While loop
                $region129: #{prompt_add.1} parent=120 // loop_pre_header
                  _
                $region130: #{prompt_add.1} parent=120 // loop_header
                  %s1294 = sphi 0, %s1296
                  %p1295 = scmp.ge.s32.totalorder %s1294, %s1283
                  %s1299 = sphi 0, %s1336
                  %s1300 = sphi %s1287, %s1339
                  %s1301 = sphi %s1290, %s1340
                $region131: #{prompt_add.1} parent=120 // loop_header_branch
                  %1298 = sbr.rel (%p1295) target = $region135
                $region132: #{prompt_add.1} parent=120 // loop_body
                  %v1302 = vld [vmem:[%s1300] sm:$0xff]
                  %1303 = vst [vmem:[%s1301] sm:$0xff] %v1302
                  %v1304 = vld [vmem:[%s1300 + $0x30] sm:$0xff]
                  %1305 = vst [vmem:[%s1301 + $0x40] sm:$0xff] %v1304
                  %v1306 = vld [vmem:[%s1300 + $0x60] sm:$0xff]
                  %1307 = vst [vmem:[%s1301 + $0x80] sm:$0xff] %v1306
                  %v1308 = vld [vmem:[%s1300 + $0x90] sm:$0xff]
                  %1309 = vst [vmem:[%s1301 + $0xc0] sm:$0xff] %v1308
                  %v1310 = vld [vmem:[%s1300 + $0xc0] sm:$0xff]
                  %1311 = vst [vmem:[%s1301 + $0x100] sm:$0xff] %v1310
                  %v1312 = vld [vmem:[%s1300 + $0xf0] sm:$0xff]
                  %1313 = vst [vmem:[%s1301 + $0x140] sm:$0xff] %v1312
                  %v1314 = vld [vmem:[%s1300 + $0x120] sm:$0xff]
                  %1315 = vst [vmem:[%s1301 + $0x180] sm:$0xff] %v1314
                  %v1316 = vld [vmem:[%s1300 + $0x150] sm:$0xff]
                  %1317 = vst [vmem:[%s1301 + $0x1c0] sm:$0xff] %v1316
                  %v1318 = vld [vmem:[%s1300 + $0x180] sm:$0xff]
                  %1319 = vst [vmem:[%s1301 + $0x200] sm:$0xff] %v1318
                  %v1320 = vld [vmem:[%s1300 + $0x1b0] sm:$0xff]
                  %1321 = vst [vmem:[%s1301 + $0x240] sm:$0xff] %v1320
                  %v1322 = vld [vmem:[%s1300 + $0x1e0] sm:$0xff]
                  %1323 = vst [vmem:[%s1301 + $0x280] sm:$0xff] %v1322
                  %v1324 = vld [vmem:[%s1300 + $0x210] sm:$0xff]
                  %1325 = vst [vmem:[%s1301 + $0x2c0] sm:$0xff] %v1324
                  %v1326 = vld [vmem:[%s1300 + $0x240] sm:$0xff]
                  %1327 = vst [vmem:[%s1301 + $0x300] sm:$0xff] %v1326
                  %v1328 = vld [vmem:[%s1300 + $0x270] sm:$0xff]
                  %1329 = vst [vmem:[%s1301 + $0x340] sm:$0xff] %v1328
                  %v1330 = vld [vmem:[%s1300 + $0x2a0] sm:$0xff]
                  %1331 = vst [vmem:[%s1301 + $0x380] sm:$0xff] %v1330
                  %v1332 = vld [vmem:[%s1300 + $0x2d0] sm:$0xff]
                  %1333 = vst [vmem:[%s1301 + $0x3c0] sm:$0xff] %v1332
                  %s1334 = sadd.s32 1, %s1299
                  %p1335 = scmp.ge.s32.totalorder %s1334, %s1283
                  %s1336 = scalar_select %p1335, 0, %s1334
                  %s1337 = smul.u32 %s1336, 8
                  %s1338 = smul.u32 %s1336, 8
                  %s1339 = scalar_lea.vmem %s1287, %s1337 [#allocation3]
                  %s1340 = scalar_lea.vmem %s1290, %s1338
                $region133: #{prompt_add.1} parent=120 // loop_footer
                  %s1296 = sadd.s32 %s1294, 1
                $region134: #{prompt_add.1} parent=120 // loop_footer_branch
                  %1293 = sbr.rel target = $region130
                $region135: #{prompt_add.1} parent=120 // loop_exit
                  _
              $region121: #{prompt_add.1} parent=105 // pred_fallthru
                _
              %p1341 = pneg %p1130
              // Predicated region
              $region136: #{prompt_add.1} parent=105 // pred_check
                _
              $region137: #{prompt_add.1} parent=105 // pred_check_branch
                %1343 = sbr.rel (%p1130) target = $region139
              $region138: #{prompt_add.1} parent=105 // pred_region
                %s1344 = sand.u32 %s1076, 7
                %s1345 = ssub.s32 %s1076, %s1344
                %s1346 = scalar_lea.vmem %s1061, %s1345 [#allocation3]
                %s1347 = ssub.s32 %s1076, %s1344
                %s1348 = scalar_lea.vmem %s1075, %s1347
                %s1349 = sshrl.u32 %s1076, 3
                %s1350 = sshrl.u32 %s1349, 2
                // While loop
                $region140: #{prompt_add.1} parent=138 // loop_pre_header
                  _
                $region141: #{prompt_add.1} parent=138 // loop_header
                  %s1354 = sphi 0, %s1356
                  %p1355 = scmp.ge.s32.totalorder %s1354, %s1350
                  %s1359 = sphi 0, %s1492
                  %s1360 = sphi %s1061, %s1495
                  %s1361 = sphi %s1075, %s1496
                $region142: #{prompt_add.1} parent=138 // loop_header_branch
                  %1358 = sbr.rel (%p1355) target = $region146
                $region143: #{prompt_add.1} parent=138 // loop_body
                  %v1362 = vld [vmem:[%s1360] sm:$0xff]
                  %1363 = vst [vmem:[%s1361] sm:$0xff] %v1362
                  %v1364 = vld [vmem:[%s1360 + $0x8] sm:$0xff]
                  %1365 = vst [vmem:[%s1361 + $0x8] sm:$0xff] %v1364
                  %v1366 = vld [vmem:[%s1360 + $0x10] sm:$0xff]
                  %1367 = vst [vmem:[%s1361 + $0x10] sm:$0xff] %v1366
                  %v1368 = vld [vmem:[%s1360 + $0x18] sm:$0xff]
                  %1369 = vst [vmem:[%s1361 + $0x18] sm:$0xff] %v1368
                  %v1370 = vld [vmem:[%s1360 + $0x30] sm:$0xff]
                  %1371 = vst [vmem:[%s1361 + $0x40] sm:$0xff] %v1370
                  %v1372 = vld [vmem:[%s1360 + $0x38] sm:$0xff]
                  %1373 = vst [vmem:[%s1361 + $0x48] sm:$0xff] %v1372
                  %v1374 = vld [vmem:[%s1360 + $0x40] sm:$0xff]
                  %1375 = vst [vmem:[%s1361 + $0x50] sm:$0xff] %v1374
                  %v1376 = vld [vmem:[%s1360 + $0x48] sm:$0xff]
                  %1377 = vst [vmem:[%s1361 + $0x58] sm:$0xff] %v1376
                  %v1378 = vld [vmem:[%s1360 + $0x60] sm:$0xff]
                  %1379 = vst [vmem:[%s1361 + $0x80] sm:$0xff] %v1378
                  %v1380 = vld [vmem:[%s1360 + $0x68] sm:$0xff]
                  %1381 = vst [vmem:[%s1361 + $0x88] sm:$0xff] %v1380
                  %v1382 = vld [vmem:[%s1360 + $0x70] sm:$0xff]
                  %1383 = vst [vmem:[%s1361 + $0x90] sm:$0xff] %v1382
                  %v1384 = vld [vmem:[%s1360 + $0x78] sm:$0xff]
                  %1385 = vst [vmem:[%s1361 + $0x98] sm:$0xff] %v1384
                  %v1386 = vld [vmem:[%s1360 + $0x90] sm:$0xff]
                  %1387 = vst [vmem:[%s1361 + $0xc0] sm:$0xff] %v1386
                  %v1388 = vld [vmem:[%s1360 + $0x98] sm:$0xff]
                  %1389 = vst [vmem:[%s1361 + $0xc8] sm:$0xff] %v1388
                  %v1390 = vld [vmem:[%s1360 + $0xa0] sm:$0xff]
                  %1391 = vst [vmem:[%s1361 + $0xd0] sm:$0xff] %v1390
                  %v1392 = vld [vmem:[%s1360 + $0xa8] sm:$0xff]
                  %1393 = vst [vmem:[%s1361 + $0xd8] sm:$0xff] %v1392
                  %v1394 = vld [vmem:[%s1360 + $0xc0] sm:$0xff]
                  %1395 = vst [vmem:[%s1361 + $0x100] sm:$0xff] %v1394
                  %v1396 = vld [vmem:[%s1360 + $0xc8] sm:$0xff]
                  %1397 = vst [vmem:[%s1361 + $0x108] sm:$0xff] %v1396
                  %v1398 = vld [vmem:[%s1360 + $0xd0] sm:$0xff]
                  %1399 = vst [vmem:[%s1361 + $0x110] sm:$0xff] %v1398
                  %v1400 = vld [vmem:[%s1360 + $0xd8] sm:$0xff]
                  %1401 = vst [vmem:[%s1361 + $0x118] sm:$0xff] %v1400
                  %v1402 = vld [vmem:[%s1360 + $0xf0] sm:$0xff]
                  %1403 = vst [vmem:[%s1361 + $0x140] sm:$0xff] %v1402
                  %v1404 = vld [vmem:[%s1360 + $0xf8] sm:$0xff]
                  %1405 = vst [vmem:[%s1361 + $0x148] sm:$0xff] %v1404
                  %v1406 = vld [vmem:[%s1360 + $0x100] sm:$0xff]
                  %1407 = vst [vmem:[%s1361 + $0x150] sm:$0xff] %v1406
                  %v1408 = vld [vmem:[%s1360 + $0x108] sm:$0xff]
                  %1409 = vst [vmem:[%s1361 + $0x158] sm:$0xff] %v1408
                  %v1410 = vld [vmem:[%s1360 + $0x120] sm:$0xff]
                  %1411 = vst [vmem:[%s1361 + $0x180] sm:$0xff] %v1410
                  %v1412 = vld [vmem:[%s1360 + $0x128] sm:$0xff]
                  %1413 = vst [vmem:[%s1361 + $0x188] sm:$0xff] %v1412
                  %v1414 = vld [vmem:[%s1360 + $0x130] sm:$0xff]
                  %1415 = vst [vmem:[%s1361 + $0x190] sm:$0xff] %v1414
                  %v1416 = vld [vmem:[%s1360 + $0x138] sm:$0xff]
                  %1417 = vst [vmem:[%s1361 + $0x198] sm:$0xff] %v1416
                  %v1418 = vld [vmem:[%s1360 + $0x150] sm:$0xff]
                  %1419 = vst [vmem:[%s1361 + $0x1c0] sm:$0xff] %v1418
                  %v1420 = vld [vmem:[%s1360 + $0x158] sm:$0xff]
                  %1421 = vst [vmem:[%s1361 + $0x1c8] sm:$0xff] %v1420
                  %v1422 = vld [vmem:[%s1360 + $0x160] sm:$0xff]
                  %1423 = vst [vmem:[%s1361 + $0x1d0] sm:$0xff] %v1422
                  %v1424 = vld [vmem:[%s1360 + $0x168] sm:$0xff]
                  %1425 = vst [vmem:[%s1361 + $0x1d8] sm:$0xff] %v1424
                  %v1426 = vld [vmem:[%s1360 + $0x180] sm:$0xff]
                  %1427 = vst [vmem:[%s1361 + $0x200] sm:$0xff] %v1426
                  %v1428 = vld [vmem:[%s1360 + $0x188] sm:$0xff]
                  %1429 = vst [vmem:[%s1361 + $0x208] sm:$0xff] %v1428
                  %v1430 = vld [vmem:[%s1360 + $0x190] sm:$0xff]
                  %1431 = vst [vmem:[%s1361 + $0x210] sm:$0xff] %v1430
                  %v1432 = vld [vmem:[%s1360 + $0x198] sm:$0xff]
                  %1433 = vst [vmem:[%s1361 + $0x218] sm:$0xff] %v1432
                  %v1434 = vld [vmem:[%s1360 + $0x1b0] sm:$0xff]
                  %1435 = vst [vmem:[%s1361 + $0x240] sm:$0xff] %v1434
                  %v1436 = vld [vmem:[%s1360 + $0x1b8] sm:$0xff]
                  %1437 = vst [vmem:[%s1361 + $0x248] sm:$0xff] %v1436
                  %v1438 = vld [vmem:[%s1360 + $0x1c0] sm:$0xff]
                  %1439 = vst [vmem:[%s1361 + $0x250] sm:$0xff] %v1438
                  %v1440 = vld [vmem:[%s1360 + $0x1c8] sm:$0xff]
                  %1441 = vst [vmem:[%s1361 + $0x258] sm:$0xff] %v1440
                  %v1442 = vld [vmem:[%s1360 + $0x1e0] sm:$0xff]
                  %1443 = vst [vmem:[%s1361 + $0x280] sm:$0xff] %v1442
                  %v1444 = vld [vmem:[%s1360 + $0x1e8] sm:$0xff]
                  %1445 = vst [vmem:[%s1361 + $0x288] sm:$0xff] %v1444
                  %v1446 = vld [vmem:[%s1360 + $0x1f0] sm:$0xff]
                  %1447 = vst [vmem:[%s1361 + $0x290] sm:$0xff] %v1446
                  %v1448 = vld [vmem:[%s1360 + $0x1f8] sm:$0xff]
                  %1449 = vst [vmem:[%s1361 + $0x298] sm:$0xff] %v1448
                  %v1450 = vld [vmem:[%s1360 + $0x210] sm:$0xff]
                  %1451 = vst [vmem:[%s1361 + $0x2c0] sm:$0xff] %v1450
                  %v1452 = vld [vmem:[%s1360 + $0x218] sm:$0xff]
                  %1453 = vst [vmem:[%s1361 + $0x2c8] sm:$0xff] %v1452
                  %v1454 = vld [vmem:[%s1360 + $0x220] sm:$0xff]
                  %1455 = vst [vmem:[%s1361 + $0x2d0] sm:$0xff] %v1454
                  %v1456 = vld [vmem:[%s1360 + $0x228] sm:$0xff]
                  %1457 = vst [vmem:[%s1361 + $0x2d8] sm:$0xff] %v1456
                  %v1458 = vld [vmem:[%s1360 + $0x240] sm:$0xff]
                  %1459 = vst [vmem:[%s1361 + $0x300] sm:$0xff] %v1458
                  %v1460 = vld [vmem:[%s1360 + $0x248] sm:$0xff]
                  %1461 = vst [vmem:[%s1361 + $0x308] sm:$0xff] %v1460
                  %v1462 = vld [vmem:[%s1360 + $0x250] sm:$0xff]
                  %1463 = vst [vmem:[%s1361 + $0x310] sm:$0xff] %v1462
                  %v1464 = vld [vmem:[%s1360 + $0x258] sm:$0xff]
                  %1465 = vst [vmem:[%s1361 + $0x318] sm:$0xff] %v1464
                  %v1466 = vld [vmem:[%s1360 + $0x270] sm:$0xff]
                  %1467 = vst [vmem:[%s1361 + $0x340] sm:$0xff] %v1466
                  %v1468 = vld [vmem:[%s1360 + $0x278] sm:$0xff]
                  %1469 = vst [vmem:[%s1361 + $0x348] sm:$0xff] %v1468
                  %v1470 = vld [vmem:[%s1360 + $0x280] sm:$0xff]
                  %1471 = vst [vmem:[%s1361 + $0x350] sm:$0xff] %v1470
                  %v1472 = vld [vmem:[%s1360 + $0x288] sm:$0xff]
                  %1473 = vst [vmem:[%s1361 + $0x358] sm:$0xff] %v1472
                  %v1474 = vld [vmem:[%s1360 + $0x2a0] sm:$0xff]
                  %1475 = vst [vmem:[%s1361 + $0x380] sm:$0xff] %v1474
                  %v1476 = vld [vmem:[%s1360 + $0x2a8] sm:$0xff]
                  %1477 = vst [vmem:[%s1361 + $0x388] sm:$0xff] %v1476
                  %v1478 = vld [vmem:[%s1360 + $0x2b0] sm:$0xff]
                  %1479 = vst [vmem:[%s1361 + $0x390] sm:$0xff] %v1478
                  %v1480 = vld [vmem:[%s1360 + $0x2b8] sm:$0xff]
                  %1481 = vst [vmem:[%s1361 + $0x398] sm:$0xff] %v1480
                  %v1482 = vld [vmem:[%s1360 + $0x2d0] sm:$0xff]
                  %1483 = vst [vmem:[%s1361 + $0x3c0] sm:$0xff] %v1482
                  %v1484 = vld [vmem:[%s1360 + $0x2d8] sm:$0xff]
                  %1485 = vst [vmem:[%s1361 + $0x3c8] sm:$0xff] %v1484
                  %v1486 = vld [vmem:[%s1360 + $0x2e0] sm:$0xff]
                  %1487 = vst [vmem:[%s1361 + $0x3d0] sm:$0xff] %v1486
                  %v1488 = vld [vmem:[%s1360 + $0x2e8] sm:$0xff]
                  %1489 = vst [vmem:[%s1361 + $0x3d8] sm:$0xff] %v1488
                  %s1490 = sadd.s32 1, %s1359
                  %p1491 = scmp.ge.s32.totalorder %s1490, %s1350
                  %s1492 = scalar_select %p1491, 0, %s1490
                  %s1493 = smul.u32 %s1492, 32
                  %s1494 = smul.u32 %s1492, 32
                  %s1495 = scalar_lea.vmem %s1061, %s1493 [#allocation3]
                  %s1496 = scalar_lea.vmem %s1075, %s1494
                $region144: #{prompt_add.1} parent=138 // loop_footer
                  %s1356 = sadd.s32 %s1354, 1
                $region145: #{prompt_add.1} parent=138 // loop_footer_branch
                  %1353 = sbr.rel target = $region141
                $region146: #{prompt_add.1} parent=138 // loop_exit
                  _
                %s1497 = sshrl.u32 %s1349, 2
                %s1498 = sand.u32 %s1349, 3
                %s1499 = smul.u32 %s1497, 4
                %s1500 = smul.u32 128, %s1499
                %s1501 = sshra.s32 %s1500, 4
                %s1502 = scalar_lea.vmem %s1061, %s1501 [#allocation3]
                %s1503 = smul.u32 128, %s1499
                %s1504 = sshra.s32 %s1503, 4
                %s1505 = scalar_lea.vmem %s1075, %s1504
                // While loop
                $region147: #{prompt_add.1} parent=138 // loop_pre_header
                  _
                $region148: #{prompt_add.1} parent=138 // loop_header
                  %s1509 = sphi 0, %s1511
                  %p1510 = scmp.ge.s32.totalorder %s1509, %s1498
                  %s1514 = sphi 0, %s1551
                  %s1515 = sphi %s1502, %s1554
                  %s1516 = sphi %s1505, %s1555
                $region149: #{prompt_add.1} parent=138 // loop_header_branch
                  %1513 = sbr.rel (%p1510) target = $region153
                $region150: #{prompt_add.1} parent=138 // loop_body
                  %v1517 = vld [vmem:[%s1515] sm:$0xff]
                  %1518 = vst [vmem:[%s1516] sm:$0xff] %v1517
                  %v1519 = vld [vmem:[%s1515 + $0x30] sm:$0xff]
                  %1520 = vst [vmem:[%s1516 + $0x40] sm:$0xff] %v1519
                  %v1521 = vld [vmem:[%s1515 + $0x60] sm:$0xff]
                  %1522 = vst [vmem:[%s1516 + $0x80] sm:$0xff] %v1521
                  %v1523 = vld [vmem:[%s1515 + $0x90] sm:$0xff]
                  %1524 = vst [vmem:[%s1516 + $0xc0] sm:$0xff] %v1523
                  %v1525 = vld [vmem:[%s1515 + $0xc0] sm:$0xff]
                  %1526 = vst [vmem:[%s1516 + $0x100] sm:$0xff] %v1525
                  %v1527 = vld [vmem:[%s1515 + $0xf0] sm:$0xff]
                  %1528 = vst [vmem:[%s1516 + $0x140] sm:$0xff] %v1527
                  %v1529 = vld [vmem:[%s1515 + $0x120] sm:$0xff]
                  %1530 = vst [vmem:[%s1516 + $0x180] sm:$0xff] %v1529
                  %v1531 = vld [vmem:[%s1515 + $0x150] sm:$0xff]
                  %1532 = vst [vmem:[%s1516 + $0x1c0] sm:$0xff] %v1531
                  %v1533 = vld [vmem:[%s1515 + $0x180] sm:$0xff]
                  %1534 = vst [vmem:[%s1516 + $0x200] sm:$0xff] %v1533
                  %v1535 = vld [vmem:[%s1515 + $0x1b0] sm:$0xff]
                  %1536 = vst [vmem:[%s1516 + $0x240] sm:$0xff] %v1535
                  %v1537 = vld [vmem:[%s1515 + $0x1e0] sm:$0xff]
                  %1538 = vst [vmem:[%s1516 + $0x280] sm:$0xff] %v1537
                  %v1539 = vld [vmem:[%s1515 + $0x210] sm:$0xff]
                  %1540 = vst [vmem:[%s1516 + $0x2c0] sm:$0xff] %v1539
                  %v1541 = vld [vmem:[%s1515 + $0x240] sm:$0xff]
                  %1542 = vst [vmem:[%s1516 + $0x300] sm:$0xff] %v1541
                  %v1543 = vld [vmem:[%s1515 + $0x270] sm:$0xff]
                  %1544 = vst [vmem:[%s1516 + $0x340] sm:$0xff] %v1543
                  %v1545 = vld [vmem:[%s1515 + $0x2a0] sm:$0xff]
                  %1546 = vst [vmem:[%s1516 + $0x380] sm:$0xff] %v1545
                  %v1547 = vld [vmem:[%s1515 + $0x2d0] sm:$0xff]
                  %1548 = vst [vmem:[%s1516 + $0x3c0] sm:$0xff] %v1547
                  %s1549 = sadd.s32 1, %s1514
                  %p1550 = scmp.ge.s32.totalorder %s1549, %s1498
                  %s1551 = scalar_select %p1550, 0, %s1549
                  %s1552 = smul.u32 %s1551, 8
                  %s1553 = smul.u32 %s1551, 8
                  %s1554 = scalar_lea.vmem %s1502, %s1552 [#allocation3]
                  %s1555 = scalar_lea.vmem %s1505, %s1553
                $region151: #{prompt_add.1} parent=138 // loop_footer
                  %s1511 = sadd.s32 %s1509, 1
                $region152: #{prompt_add.1} parent=138 // loop_footer_branch
                  %1508 = sbr.rel target = $region148
                $region153: #{prompt_add.1} parent=138 // loop_exit
                  _
                %s1556 = sshll.u32 1, %s1344
                %s1557 = ssub.s32 %s1556, 1
                loop: start=0, step=1, limit=1
                $region154: #{prompt_add.1} parent=138 // loop_pre_header
                  _
                $region155: #{prompt_add.1} parent=138 // loop_header
                  %s1559 = sphi 0, %s1563
                  %p1560 = scmp.ge.s32.totalorder %s1559, 1
                  %s1564 = sphi %s1346, %s1346
                  %s1565 = sphi %s1348, %s1348
                $region156: #{prompt_add.1} parent=138 // loop_header_branch
                  %1562 = sbr.rel (%p1560) target = $region160
                $region157: #{prompt_add.1} parent=138 // loop_body
                  %v1566 = vld [vmem:[%s1564] sm:%s1557]
                  %1567 = vst [vmem:[%s1565] sm:%s1557] %v1566
                  %v1568 = vld [vmem:[%s1564 + $0x30] sm:%s1557]
                  %1569 = vst [vmem:[%s1565 + $0x40] sm:%s1557] %v1568
                  %v1570 = vld [vmem:[%s1564 + $0x60] sm:%s1557]
                  %1571 = vst [vmem:[%s1565 + $0x80] sm:%s1557] %v1570
                  %v1572 = vld [vmem:[%s1564 + $0x90] sm:%s1557]
                  %1573 = vst [vmem:[%s1565 + $0xc0] sm:%s1557] %v1572
                  %v1574 = vld [vmem:[%s1564 + $0xc0] sm:%s1557]
                  %1575 = vst [vmem:[%s1565 + $0x100] sm:%s1557] %v1574
                  %v1576 = vld [vmem:[%s1564 + $0xf0] sm:%s1557]
                  %1577 = vst [vmem:[%s1565 + $0x140] sm:%s1557] %v1576
                  %v1578 = vld [vmem:[%s1564 + $0x120] sm:%s1557]
                  %1579 = vst [vmem:[%s1565 + $0x180] sm:%s1557] %v1578
                  %v1580 = vld [vmem:[%s1564 + $0x150] sm:%s1557]
                  %1581 = vst [vmem:[%s1565 + $0x1c0] sm:%s1557] %v1580
                  %v1582 = vld [vmem:[%s1564 + $0x180] sm:%s1557]
                  %1583 = vst [vmem:[%s1565 + $0x200] sm:%s1557] %v1582
                  %v1584 = vld [vmem:[%s1564 + $0x1b0] sm:%s1557]
                  %1585 = vst [vmem:[%s1565 + $0x240] sm:%s1557] %v1584
                  %v1586 = vld [vmem:[%s1564 + $0x1e0] sm:%s1557]
                  %1587 = vst [vmem:[%s1565 + $0x280] sm:%s1557] %v1586
                  %v1588 = vld [vmem:[%s1564 + $0x210] sm:%s1557]
                  %1589 = vst [vmem:[%s1565 + $0x2c0] sm:%s1557] %v1588
                  %v1590 = vld [vmem:[%s1564 + $0x240] sm:%s1557]
                  %1591 = vst [vmem:[%s1565 + $0x300] sm:%s1557] %v1590
                  %v1592 = vld [vmem:[%s1564 + $0x270] sm:%s1557]
                  %1593 = vst [vmem:[%s1565 + $0x340] sm:%s1557] %v1592
                  %v1594 = vld [vmem:[%s1564 + $0x2a0] sm:%s1557]
                  %1595 = vst [vmem:[%s1565 + $0x380] sm:%s1557] %v1594
                  %v1596 = vld [vmem:[%s1564 + $0x2d0] sm:%s1557]
                  %1597 = vst [vmem:[%s1565 + $0x3c0] sm:%s1557] %v1596
                $region158: #{prompt_add.1} parent=138 // loop_footer
                  %s1563 = sadd.s32 1, %s1559
                $region159: #{prompt_add.1} parent=138 // loop_footer_branch
                  %1558 = sbr.rel target = $region155
                $region160: #{prompt_add.1} parent=138 // loop_exit
                  _
              $region139: #{prompt_add.1} parent=105 // pred_fallthru
                _
            $region106: #{prompt_add.1} parent=101 // pred_fallthru
              _
            // Predicated region
            $region107: #{prompt_add.1} parent=101 // pred_check
              %p1084 = pneg %p1080
            $region108: #{prompt_add.1} parent=101 // pred_check_branch
              %1086 = sbr.rel (%p1084) target = $region110
            $region109: #{prompt_add.1} parent=101 // pred_region
              %s1087 = sshll.u32 1, %s1076
              %s1088 = ssub.s32 %s1087, 1
              loop: start=0, step=1, limit=1
              $region111: #{prompt_add.1} parent=109 // loop_pre_header
                _
              $region112: #{prompt_add.1} parent=109 // loop_header
                %s1090 = sphi 0, %s1094
                %p1091 = scmp.ge.s32.totalorder %s1090, 1
                %s1095 = sphi %s1061, %s1061
                %s1096 = sphi %s1075, %s1075
              $region113: #{prompt_add.1} parent=109 // loop_header_branch
                %1093 = sbr.rel (%p1091) target = $region117
              $region114: #{prompt_add.1} parent=109 // loop_body
                %v1097 = vld [vmem:[%s1095] sm:%s1088]
                %1098 = vst [vmem:[%s1096] sm:%s1088] %v1097
                %v1099 = vld [vmem:[%s1095 + $0x30] sm:%s1088]
                %1100 = vst [vmem:[%s1096 + $0x40] sm:%s1088] %v1099
                %v1101 = vld [vmem:[%s1095 + $0x60] sm:%s1088]
                %1102 = vst [vmem:[%s1096 + $0x80] sm:%s1088] %v1101
                %v1103 = vld [vmem:[%s1095 + $0x90] sm:%s1088]
                %1104 = vst [vmem:[%s1096 + $0xc0] sm:%s1088] %v1103
                %v1105 = vld [vmem:[%s1095 + $0xc0] sm:%s1088]
                %1106 = vst [vmem:[%s1096 + $0x100] sm:%s1088] %v1105
                %v1107 = vld [vmem:[%s1095 + $0xf0] sm:%s1088]
                %1108 = vst [vmem:[%s1096 + $0x140] sm:%s1088] %v1107
                %v1109 = vld [vmem:[%s1095 + $0x120] sm:%s1088]
                %1110 = vst [vmem:[%s1096 + $0x180] sm:%s1088] %v1109
                %v1111 = vld [vmem:[%s1095 + $0x150] sm:%s1088]
                %1112 = vst [vmem:[%s1096 + $0x1c0] sm:%s1088] %v1111
                %v1113 = vld [vmem:[%s1095 + $0x180] sm:%s1088]
                %1114 = vst [vmem:[%s1096 + $0x200] sm:%s1088] %v1113
                %v1115 = vld [vmem:[%s1095 + $0x1b0] sm:%s1088]
                %1116 = vst [vmem:[%s1096 + $0x240] sm:%s1088] %v1115
                %v1117 = vld [vmem:[%s1095 + $0x1e0] sm:%s1088]
                %1118 = vst [vmem:[%s1096 + $0x280] sm:%s1088] %v1117
                %v1119 = vld [vmem:[%s1095 + $0x210] sm:%s1088]
                %1120 = vst [vmem:[%s1096 + $0x2c0] sm:%s1088] %v1119
                %v1121 = vld [vmem:[%s1095 + $0x240] sm:%s1088]
                %1122 = vst [vmem:[%s1096 + $0x300] sm:%s1088] %v1121
                %v1123 = vld [vmem:[%s1095 + $0x270] sm:%s1088]
                %1124 = vst [vmem:[%s1096 + $0x340] sm:%s1088] %v1123
                %v1125 = vld [vmem:[%s1095 + $0x2a0] sm:%s1088]
                %1126 = vst [vmem:[%s1096 + $0x380] sm:%s1088] %v1125
                %v1127 = vld [vmem:[%s1095 + $0x2d0] sm:%s1088]
                %1128 = vst [vmem:[%s1096 + $0x3c0] sm:%s1088] %v1127
              $region115: #{prompt_add.1} parent=109 // loop_footer
                %s1094 = sadd.s32 1, %s1090
              $region116: #{prompt_add.1} parent=109 // loop_footer_branch
                %1089 = sbr.rel target = $region112
              $region117: #{prompt_add.1} parent=109 // loop_exit
                _
            $region110: #{prompt_add.1} parent=101 // pred_fallthru
              _
          $region102: #{prompt_add.1} parent=97 // pred_fallthru
            _
          %1598 = vnop
        $region98: #{prompt_add.1} parent=89 // pred_fallthru
          _
      $region90: #{prompt_add.1} parent=5 // pred_fallthru
        _
      %p1599 = scmp.le.s32.totalorder 2, %s8
      // Predicated region
      $region161: #{prompt_add.1} parent=5 // pred_check
        %p1600 = pneg %p1599
      $region162: #{prompt_add.1} parent=5 // pred_check_branch
        %1602 = sbr.rel (%p1600) target = $region164
      $region163: #{prompt_add.1} parent=5 // pred_region
        %s1603 = ssub.s32 %s8, 2
        // Predicated region
        $region165: #{prompt_add.1} parent=163 // pred_check
          %p1604 = pneg %p105
        $region166: #{prompt_add.1} parent=163 // pred_check_branch
          %1606 = sbr.rel (%p1604) target = $region168
        $region167: #{prompt_add.1} parent=163 // pred_region
          %s1607 = sand.u32 %s90, 1
          %s1608 = sand.u32 %s90, 1
          %s1609 = smul.addr %s1608, 768
          %s1610 = scalar_lea.vmem [#allocation3], %s1609
        $region168: #{prompt_add.1} parent=163 // pred_fallthru
          _
      $region164: #{prompt_add.1} parent=5 // pred_fallthru
        _
    $region6: #{prompt_add.1} parent=1 // loop_footer
      %s12 = sadd.s32 1, %s8
    $region7: #{prompt_add.1} parent=1 // loop_footer_branch
      %7 = sbr.rel target = $region3
    $region8: #{prompt_add.1} parent=1 // loop_exit
      _

</llo_original>
